<compile_context>
chip_gen: v7x
topology: tpu7x:2x2x1
jax: 0.10.0
libtpu: 0.0.40
codegen_flags: <defaults>
</compile_context>

<pallas_src>
import jax
import jax.numpy as jnp
from jax.experimental import pallas as pl
from jax.experimental.pallas import tpu as pltpu

# ----------------------- synthetic small CLIP-vision config -----------------
IMAGE_SIZE = 16
PATCH_SIZE = 8
IN_CHANNELS = 3
HIDDEN = 32
INTERMEDIATE = 64
NUM_LAYERS = 2
NUM_HEADS = 4
HEAD_DIM = HIDDEN // NUM_HEADS
NUM_PATCHES = (IMAGE_SIZE // PATCH_SIZE) ** 2
SEQ = NUM_PATCHES + 1            # +1 for the CLS token
LN_EPS = 1e-5
SELECT_LAYER = -2                # args.vision_select_layer
SELECT_FEATURE = "patch"         # args.vision_select_feature
CONV_STRIDE = 1                  # only used by the num_patches property


# ------------------------------ shared helpers --------------------------------
def _ln(x, g, b):
    """LayerNorm over the last dim.  x:[N,D] f32, g/b:[1,D] f32."""
    mean = jnp.mean(x, axis=-1, keepdims=True)
    c = x - mean
    var = jnp.mean(c * c, axis=-1, keepdims=True)
    return c * jax.lax.rsqrt(var + LN_EPS) * g + b


# ----------------------------- fused tower kernel -----------------------------
def _tower_kernel(patches_ref, wpatch_ref, emb_ref, bias_ref,
                  preg_ref, preb_ref,
                  ln1g_ref, ln1b_ref, wqkv_ref, bqkv_ref, wo_ref, bo_ref,
                  ln2g_ref, ln2b_ref, fc1w_ref, fc1b_ref, fc2w_ref, fc2b_ref,
                  o_ref, x_scr):
    """One fused CLIP encoder layer per grid step (grid axis = layer index).

    x_scr ([B*SEQ, H] f32 VMEM scratch) carries the hidden state across layers.
    l == 0 additionally computes patch-embedding + positional add + pre-LN.
    Batch separation in attention is enforced via the block-diagonal additive
    bias in bias_ref, so every matmul is a single lane-dense 2-D dot.
    """
    l = pl.program_id(0)
    BS, H = x_scr.shape
    NH, DH = NUM_HEADS, HEAD_DIM

    @pl.when(l == 0)
    def _():
        # patch-embedding matmul; CLS rows of `patches` are zero rows, so the
        # additive embedding (cls+pos[0] on CLS rows, pos[1:] elsewhere) and
        # the pre-LayerNorm complete the embeddings in one shot.
        pe = jnp.dot(patches_ref[...], wpatch_ref[...],
                     preferred_element_type=jnp.float32)          # [BS, H]
        x_scr[...] = _ln(pe + emb_ref[...], preg_ref[...], preb_ref[...])

    xt = x_scr[...]                                               # [BS, H] f32
    attn_bias = bias_ref[...]                                     # [BS, BS] f32

    # --- self-attention: LN1 + fused QKV + per-head softmax + out-proj + res --
    h = _ln(xt, ln1g_ref[0], ln1b_ref[0]).astype(jnp.bfloat16)
    qkv = jnp.dot(h, wqkv_ref[0],
                  preferred_element_type=jnp.float32) + bqkv_ref[0]   # [BS, 3H]
    qkv = qkv.astype(jnp.bfloat16)          # q-scale already folded into wqkv

    heads = []
    for hd in range(NH):                    # NH small; each dot batches all images
        q_h = qkv[:, hd * DH:(hd + 1) * DH]
        k_h = qkv[:, H + hd * DH:H + (hd + 1) * DH]
        v_h = qkv[:, 2 * H + hd * DH:2 * H + (hd + 1) * DH]
        s = jnp.einsum('qd,kd->qk', q_h, k_h,
                       preferred_element_type=jnp.float32) + attn_bias
        m = jnp.max(s, axis=-1, keepdims=True)
        p = jnp.exp(s - m)
        p = p * pl.reciprocal(jnp.sum(p, axis=-1, keepdims=True), approx=True)
        heads.append(jnp.dot(p.astype(jnp.bfloat16), v_h,
                             preferred_element_type=jnp.float32))     # [BS, DH]
    ctx = jnp.concatenate(heads, axis=-1).astype(jnp.bfloat16)        # [BS, H]
    xt = xt + jnp.dot(ctx, wo_ref[0],
                      preferred_element_type=jnp.float32) + bo_ref[0]

    # --- MLP: LN2 + fc1 + quick-GELU + fc2 + residual ---
    h = _ln(xt, ln2g_ref[0], ln2b_ref[0]).astype(jnp.bfloat16)
    h = jnp.dot(h, fc1w_ref[0], preferred_element_type=jnp.float32) + fc1b_ref[0]
    h = h * jax.nn.sigmoid(1.702 * h)                               # quick-GELU
    xt = xt + jnp.dot(h.astype(jnp.bfloat16), fc2w_ref[0],
                      preferred_element_type=jnp.float32) + fc2b_ref[0]

    x_scr[...] = xt

    @pl.when(l == pl.num_programs(0) - 1)
    def _():
        o_ref[...] = xt.astype(o_ref.dtype)


def run_tower(patches, w_patch, emb, attn_bias, pre_g, pre_b, pk, num_layers):
    BS, Kp = patches.shape
    H, I = HIDDEN, INTERMEDIATE
    const2 = lambda l: (0, 0)
    lay3 = lambda l: (l, 0, 0)
    in_specs = [
        pl.BlockSpec((BS, Kp), const2),          # unfolded patches (CLS rows = 0)
        pl.BlockSpec((Kp, H), const2),           # patch-embedding weight
        pl.BlockSpec((BS, H), const2),           # cls/pos additive embedding
        pl.BlockSpec((BS, BS), const2),          # block-diagonal attention bias
        pl.BlockSpec((1, H), const2),            # pre_ln gamma
        pl.BlockSpec((1, H), const2),            # pre_ln beta
        pl.BlockSpec((1, 1, H), lay3),           # ln1 gamma
        pl.BlockSpec((1, 1, H), lay3),           # ln1 beta
        pl.BlockSpec((1, H, 3 * H), lay3),       # fused QKV weight
        pl.BlockSpec((1, 1, 3 * H), lay3),       # fused QKV bias
        pl.BlockSpec((1, H, H), lay3),           # out-proj weight
        pl.BlockSpec((1, 1, H), lay3),           # out-proj bias
        pl.BlockSpec((1, 1, H), lay3),           # ln2 gamma
        pl.BlockSpec((1, 1, H), lay3),           # ln2 beta
        pl.BlockSpec((1, H, I), lay3),           # fc1 weight
        pl.BlockSpec((1, 1, I), lay3),           # fc1 bias
        pl.BlockSpec((1, I, H), lay3),           # fc2 weight
        pl.BlockSpec((1, 1, H), lay3),           # fc2 bias
    ]
    return pl.pallas_call(
        _tower_kernel,
        out_shape=jax.ShapeDtypeStruct((BS, H), jnp.float32),
        grid=(num_layers,),
        in_specs=in_specs,
        out_specs=pl.BlockSpec((BS, H), const2),
        scratch_shapes=[pltpu.VMEM((BS, H), jnp.float32)],
        compiler_params=pltpu.CompilerParams(
            dimension_semantics=("arbitrary",)),   # layers are sequential
    )(patches, w_patch, emb, attn_bias,
      pre_g.reshape(1, H), pre_b.reshape(1, H),
      pk["ln1_g"], pk["ln1_b"], pk["wqkv"], pk["bqkv"], pk["wo"], pk["bo"],
      pk["ln2_g"], pk["ln2_b"], pk["fc1_w"], pk["fc1_b"], pk["fc2_w"], pk["fc2_b"])


# -------- fallback: embeddings + pre-LN only (SELECT_LAYER needing 0 layers) --
def _embed_ln_kernel(p_ref, w_ref, e_ref, g_ref, b_ref, o_ref):
    pe = jnp.dot(p_ref[...], w_ref[...], preferred_element_type=jnp.float32)
    o_ref[...] = _ln(pe + e_ref[...], g_ref[...], b_ref[...]).astype(o_ref.dtype)


def embed_ln(patches, w_patch, emb, g, b):
    BS = patches.shape[0]
    H = w_patch.shape[1]
    return pl.pallas_call(
        _embed_ln_kernel,
        out_shape=jax.ShapeDtypeStruct((BS, H), jnp.float32),
    )(patches, w_patch, emb, g.reshape(1, H), b.reshape(1, H))


# ----------------------------- parameter init --------------------------------
def init_params(key):
    def nrm(k, shape, scale=0.02):
        return scale * jax.random.normal(k, shape, dtype=jnp.float32)

    keys = jax.random.split(key, 4 + NUM_LAYERS)
    params = {
        "class_embedding": nrm(keys[0], (HIDDEN,)),
        "patch_embed_w": nrm(keys[1], (HIDDEN, IN_CHANNELS, PATCH_SIZE, PATCH_SIZE)),
        "position_embedding": nrm(keys[2], (SEQ, HIDDEN)),
        "pre_ln_g": jnp.ones((HIDDEN,), jnp.float32),
        "pre_ln_b": jnp.zeros((HIDDEN,), jnp.float32),
        "layers": [],
    }
    for l in range(NUM_LAYERS):
        lk = jax.random.split(keys[4 + l], 6)
        params["layers"].append({
            "ln1_g": jnp.ones((HIDDEN,), jnp.float32),
            "ln1_b": jnp.zeros((HIDDEN,), jnp.float32),
            "q_w": nrm(lk[0], (HIDDEN, HIDDEN)), "q_b": jnp.zeros((HIDDEN,), jnp.float32),
            "k_w": nrm(lk[1], (HIDDEN, HIDDEN)), "k_b": jnp.zeros((HIDDEN,), jnp.float32),
            "v_w": nrm(lk[2], (HIDDEN, HIDDEN)), "v_b": jnp.zeros((HIDDEN,), jnp.float32),
            "o_w": nrm(lk[3], (HIDDEN, HIDDEN)), "o_b": jnp.zeros((HIDDEN,), jnp.float32),
            "ln2_g": jnp.ones((HIDDEN,), jnp.float32),
            "ln2_b": jnp.zeros((HIDDEN,), jnp.float32),
            "fc1_w": nrm(lk[4], (HIDDEN, INTERMEDIATE)),
            "fc1_b": jnp.zeros((INTERMEDIATE,), jnp.float32),
            "fc2_w": nrm(lk[5], (INTERMEDIATE, HIDDEN)),
            "fc2_b": jnp.zeros((HIDDEN,), jnp.float32),
        })
    return params


def pack_layers(params, L):
    """Stack the first L layers' weights on a leading layer axis.

    QKV weights/biases are fused to [L,H,3H]/[L,1,3H] with the 1/sqrt(head_dim)
    attention scale folded into the Q columns; MXU weights are bf16.
    """
    ls = params["layers"][:L]
    H, I = HIDDEN, INTERMEDIATE
    scale = HEAD_DIM ** -0.5

    def stk(name):
        return jnp.stack([lyr[name] for lyr in ls], axis=0)

    wqkv = jnp.concatenate([stk("q_w") * scale, stk("k_w"), stk("v_w")], axis=-1)
    bqkv = jnp.concatenate([stk("q_b") * scale, stk("k_b"), stk("v_b")], axis=-1)
    return {
        "ln1_g": stk("ln1_g").reshape(L, 1, H),
        "ln1_b": stk("ln1_b").reshape(L, 1, H),
        "wqkv": wqkv.astype(jnp.bfloat16),                 # [L, H, 3H]
        "bqkv": bqkv.reshape(L, 1, 3 * H),                 # [L, 1, 3H] f32
        "wo": stk("o_w").astype(jnp.bfloat16),             # [L, H, H]
        "bo": stk("o_b").reshape(L, 1, H),
        "ln2_g": stk("ln2_g").reshape(L, 1, H),
        "ln2_b": stk("ln2_b").reshape(L, 1, H),
        "fc1_w": stk("fc1_w").astype(jnp.bfloat16),        # [L, H, I]
        "fc1_b": stk("fc1_b").reshape(L, 1, I),
        "fc2_w": stk("fc2_w").astype(jnp.bfloat16),        # [L, I, H]
        "fc2_b": stk("fc2_b").reshape(L, 1, H),
    }


# --------------------------- CLIP vision transformer -------------------------
def vision_tower_forward(pixel_values, params):
    """pixel_values: [B, C, H, W] (NCHW).  Returns hidden_states[SELECT_LAYER]
    ([B, SEQ, HIDDEN]); encoder layers past the selected one are never run."""
    B = pixel_values.shape[0]
    gh = gw = IMAGE_SIZE // PATCH_SIZE
    C, P, H, S = IN_CHANNELS, PATCH_SIZE, HIDDEN, SEQ
    NP = gh * gw
    BS = B * S

    # Patch-embedding conv == unfold + matmul; the unfold (and the zero "CLS"
    # row inserted per image so row b*S is the CLS slot) is host-side glue.
    patches = pixel_values.reshape(B, C, gh, P, gw, P)
    patches = patches.transpose(0, 2, 4, 1, 3, 5).reshape(B, NP, C * P * P)
    K = C * P * P
    Kpad = ((K + 127) // 128) * 128                   # MXU-aligned contraction dim
    patches = jnp.pad(patches, ((0, 0), (0, 0), (0, Kpad - K)))
    patches_full = jnp.concatenate(
        [jnp.zeros((B, 1, Kpad), patches.dtype), patches], axis=1
    ).reshape(BS, Kpad).astype(jnp.bfloat16)

    w_patch = params["patch_embed_w"].reshape(H, K).T          # [K, H]
    w_patch = jnp.pad(w_patch, ((0, Kpad - K), (0, 0))).astype(jnp.bfloat16)

    # Per-token additive embedding: CLS row = cls + pos[0], patch rows = pos[1:]
    # (CLS rows of patches_full are zero, so one matmul + add builds x0).
    emb = params["position_embedding"].at[0].add(params["class_embedding"])
    emb_full = jnp.tile(emb, (B, 1)).astype(jnp.float32)        # [BS, H]

    # Block-diagonal additive attention bias: tokens only attend within their image.
    tok_img = jnp.repeat(jnp.arange(B, dtype=jnp.int32), S)
    attn_bias = jnp.where(tok_img[:, None] == tok_img[None, :],
                          jnp.float32(0.0), jnp.float32(-1e30))  # [BS, BS]

    # hidden_states[i] == output after i encoder layers (index 0 = post-pre-LN
    # embeddings) -> only run the layers needed for SELECT_LAYER.
    layers_needed = SELECT_LAYER % (NUM_LAYERS + 1)
    if layers_needed == 0:
        out = embed_ln(patches_full, w_patch, emb_full,
                       params["pre_ln_g"], params["pre_ln_b"])
    else:
        packed = pack_layers(params, layers_needed)
        out = run_tower(patches_full, w_patch, emb_full, attn_bias,
                        params["pre_ln_g"], params["pre_ln_b"],
                        packed, layers_needed)
    return out.reshape(B, S, H)


# ----------------------------- CLIPVisionTower API ---------------------------
def feature_select(hidden_state):
    if SELECT_FEATURE == "patch":
        return hidden_state[:, 1:]
    elif SELECT_FEATURE == "cls_patch":
        return hidden_state
    raise ValueError(f"Unexpected select feature: {SELECT_FEATURE}")


@jax.jit
def _tower_features(concat_images, params):
    return feature_select(vision_tower_forward(concat_images, params))


def clip_vision_tower_forward(images, params):
    """images: list of [Ni, C, H, W] arrays -> list of [Ni, num_patches, HIDDEN]."""
    # TODO(synk): pytorch_model.bin weight loading, CLIPImageProcessor preprocessing
    # and torch.set_grad_enabled / freeze_vision_tower have no forward-pass kernel
    # equivalent; parameters are synthetic and grad toggling is a training concern.
    concat_images = jnp.concatenate([im for im in images], axis=0).astype(jnp.float32)
    split_sizes = [im.shape[0] for im in images]
    feats = _tower_features(concat_images, params).astype(images[0].dtype)
    out, start = [], 0
    for s in split_sizes:
        out.append(feats[start:start + s])
        start += s
    return out


# ----------------------------------- main -------------------------------------
if __name__ == "__main__":
    root = jax.random.PRNGKey(0)
    k_params, k_img0, k_img1 = jax.random.split(root, 3)

    params = init_params(k_params)
    images = [
        jax.random.normal(k_img0, (2, IN_CHANNELS, IMAGE_SIZE, IMAGE_SIZE), jnp.float32),
        jax.random.normal(k_img1, (1, IN_CHANNELS, IMAGE_SIZE, IMAGE_SIZE), jnp.float32),
    ]

    feats = clip_vision_tower_forward(images, params)
    feats = jax.block_until_ready(feats)

    assert feats[0].shape == (2, NUM_PATCHES, HIDDEN)
    assert feats[1].shape == (1, NUM_PATCHES, HIDDEN)
    print("KERNEL_OK")
</pallas_src>

<mosaic_0001>
module attributes {stable_mosaic.version = 11 : i64} {
  func.func @_tower_kernel(%arg0: i32, %arg1: memref<15x256xbf16, #tpu.memory_space<vmem>>, %arg2: memref<256x32xbf16, #tpu.memory_space<vmem>>, %arg3: memref<15x32xf32, #tpu.memory_space<vmem>>, %arg4: memref<15x15xf32, #tpu.memory_space<vmem>>, %arg5: memref<1x32xf32, #tpu.memory_space<vmem>>, %arg6: memref<1x32xf32, #tpu.memory_space<vmem>>, %arg7: memref<1x1x32xf32, #tpu.memory_space<vmem>>, %arg8: memref<1x1x32xf32, #tpu.memory_space<vmem>>, %arg9: memref<1x32x96xbf16, #tpu.memory_space<vmem>>, %arg10: memref<1x1x96xf32, #tpu.memory_space<vmem>>, %arg11: memref<1x32x32xbf16, #tpu.memory_space<vmem>>, %arg12: memref<1x1x32xf32, #tpu.memory_space<vmem>>, %arg13: memref<1x1x32xf32, #tpu.memory_space<vmem>>, %arg14: memref<1x1x32xf32, #tpu.memory_space<vmem>>, %arg15: memref<1x32x64xbf16, #tpu.memory_space<vmem>>, %arg16: memref<1x1x64xf32, #tpu.memory_space<vmem>>, %arg17: memref<1x64x32xbf16, #tpu.memory_space<vmem>>, %arg18: memref<1x1x32xf32, #tpu.memory_space<vmem>>, %arg19: memref<15x32xf32, #tpu.memory_space<vmem>>, %arg20: memref<15x32xf32, #tpu.memory_space<vmem>>) attributes {dimension_semantics = [#tpu.dimension_semantics<arbitrary>], iteration_bounds = array<i64: 1>, scalar_prefetch = 0 : i64, scratch_operands = 1 : i64, tpu.core_type = #tpu.core_type<tc>, window_params = [{pipeline_mode = #tpu.pipeline_mode<synchronous>, transform_indices = @transform_0, window_bounds = array<i64: 15, 256>}, {pipeline_mode = #tpu.pipeline_mode<synchronous>, transform_indices = @transform_1, window_bounds = array<i64: 256, 32>}, {pipeline_mode = #tpu.pipeline_mode<synchronous>, transform_indices = @transform_2, window_bounds = array<i64: 15, 32>}, {pipeline_mode = #tpu.pipeline_mode<synchronous>, transform_indices = @transform_3, window_bounds = array<i64: 15, 15>}, {pipeline_mode = #tpu.pipeline_mode<synchronous>, transform_indices = @transform_4, window_bounds = array<i64: 1, 32>}, {pipeline_mode = #tpu.pipeline_mode<synchronous>, transform_indices = @transform_5, window_bounds = array<i64: 1, 32>}, {transform_indices = @transform_6, window_bounds = array<i64: 1, 1, 32>}, {transform_indices = @transform_7, window_bounds = array<i64: 1, 1, 32>}, {transform_indices = @transform_8, window_bounds = array<i64: 1, 32, 96>}, {transform_indices = @transform_9, window_bounds = array<i64: 1, 1, 96>}, {transform_indices = @transform_10, window_bounds = array<i64: 1, 32, 32>}, {transform_indices = @transform_11, window_bounds = array<i64: 1, 1, 32>}, {transform_indices = @transform_12, window_bounds = array<i64: 1, 1, 32>}, {transform_indices = @transform_13, window_bounds = array<i64: 1, 1, 32>}, {transform_indices = @transform_14, window_bounds = array<i64: 1, 32, 64>}, {transform_indices = @transform_15, window_bounds = array<i64: 1, 1, 64>}, {transform_indices = @transform_16, window_bounds = array<i64: 1, 64, 32>}, {transform_indices = @transform_17, window_bounds = array<i64: 1, 1, 32>}, {pipeline_mode = #tpu.pipeline_mode<synchronous>, transform_indices = @transform_18, window_bounds = array<i64: 15, 32>}]} {
    %c0_i32 = arith.constant 0 : i32
    %0 = arith.cmpi eq, %arg0, %c0_i32 : i32
    %1 = arith.extui %0 : i1 to i32
    %c0_i32_0 = arith.constant 0 : i32
    %2 = arith.cmpi ne, %1, %c0_i32_0 : i32
    scf.if %2 {
      %c0_75 = arith.constant 0 : index
      %c0_76 = arith.constant 0 : index
      %169 = vector.load %arg1[%c0_75, %c0_76] : memref<15x256xbf16, #tpu.memory_space<vmem>>, vector<15x256xbf16>
      %c0_77 = arith.constant 0 : index
      %c0_78 = arith.constant 0 : index
      %170 = vector.load %arg2[%c0_77, %c0_78] : memref<256x32xbf16, #tpu.memory_space<vmem>>, vector<256x32xbf16>
      %cst_79 = arith.constant dense<0.000000e+00> : vector<15x32xf32>
      %171 = tpu.matmul %169, %170, %cst_79 {dimension_numbers = #tpu.dot_dimension_numbers<[1], [0], [0], [1], [0, 0, 1, 1], [], []>} : vector<15x256xbf16>, vector<256x32xbf16>, vector<15x32xf32> -> vector<15x32xf32>
      %c0_80 = arith.constant 0 : index
      %c0_81 = arith.constant 0 : index
      %172 = vector.load %arg3[%c0_80, %c0_81] : memref<15x32xf32, #tpu.memory_space<vmem>>, vector<15x32xf32>
      %173 = arith.addf %171, %172 : vector<15x32xf32>
      %c0_82 = arith.constant 0 : index
      %c0_83 = arith.constant 0 : index
      %174 = vector.load %arg5[%c0_82, %c0_83] : memref<1x32xf32, #tpu.memory_space<vmem>>, vector<1x32xf32>
      %c0_84 = arith.constant 0 : index
      %c0_85 = arith.constant 0 : index
      %175 = vector.load %arg6[%c0_84, %c0_85] : memref<1x32xf32, #tpu.memory_space<vmem>>, vector<1x32xf32>
      %cst_86 = arith.constant dense<0.000000e+00> : vector<15xf32>
      %176 = vector.multi_reduction <add>, %173, %cst_86 [1] : vector<15x32xf32> to vector<15xf32>
      %177 = vector.shape_cast %176 : vector<15xf32> to vector<15x1xf32>
      %cst_87 = arith.constant 3.200000e+01 : f32
      %178 = vector.broadcast %cst_87 : f32 to vector<15x1xf32>
      %179 = arith.divf %177, %178 : vector<15x1xf32>
      %180 = vector.broadcast %179 : vector<15x1xf32> to vector<15x32xf32>
      %181 = arith.subf %173, %180 : vector<15x32xf32>
      %182 = arith.mulf %181, %181 : vector<15x32xf32>
      %cst_88 = arith.constant dense<0.000000e+00> : vector<15xf32>
      %183 = vector.multi_reduction <add>, %182, %cst_88 [1] : vector<15x32xf32> to vector<15xf32>
      %184 = vector.shape_cast %183 : vector<15xf32> to vector<15x1xf32>
      %cst_89 = arith.constant 3.200000e+01 : f32
      %185 = vector.broadcast %cst_89 : f32 to vector<15x1xf32>
      %186 = arith.divf %184, %185 : vector<15x1xf32>
      %cst_90 = arith.constant 9.99999974E-6 : f32
      %187 = vector.broadcast %cst_90 : f32 to vector<15x1xf32>
      %188 = arith.addf %186, %187 : vector<15x1xf32>
      %189 = math.rsqrt %188 : vector<15x1xf32>
      %190 = vector.broadcast %189 : vector<15x1xf32> to vector<15x32xf32>
      %191 = arith.mulf %181, %190 : vector<15x32xf32>
      %192 = vector.broadcast %174 : vector<1x32xf32> to vector<15x32xf32>
      %193 = arith.mulf %191, %192 : vector<15x32xf32>
      %194 = vector.broadcast %175 : vector<1x32xf32> to vector<15x32xf32>
      %195 = arith.addf %193, %194 : vector<15x32xf32>
      %c0_91 = arith.constant 0 : index
      %c0_92 = arith.constant 0 : index
      %196 = vector.load %arg20[%c0_91, %c0_92] : memref<15x32xf32, #tpu.memory_space<vmem>>, vector<15x32xf32>
      tpu.vector_store %arg20[%c0_91, %c0_92], %195 {strides = array<i32>} : memref<15x32xf32, #tpu.memory_space<vmem>>, vector<15x32xf32>,
    } else {
    }
    %c0 = arith.constant 0 : index
    %c0_1 = arith.constant 0 : index
    %3 = vector.load %arg20[%c0, %c0_1] : memref<15x32xf32, #tpu.memory_space<vmem>>, vector<15x32xf32>
    %c0_2 = arith.constant 0 : index
    %c0_3 = arith.constant 0 : index
    %4 = vector.load %arg4[%c0_2, %c0_3] : memref<15x15xf32, #tpu.memory_space<vmem>>, vector<15x15xf32>
    %c0_4 = arith.constant 0 : index
    %c0_5 = arith.constant 0 : index
    %c0_6 = arith.constant 0 : index
    %5 = vector.load %arg7[%c0_4, %c0_5, %c0_6] : memref<1x1x32xf32, #tpu.memory_space<vmem>>, vector<1x1x32xf32>
    %6 = vector.shape_cast %5 : vector<1x1x32xf32> to vector<1x32xf32>
    %c0_7 = arith.constant 0 : index
    %c0_8 = arith.constant 0 : index
    %c0_9 = arith.constant 0 : index
    %7 = vector.load %arg8[%c0_7, %c0_8, %c0_9] : memref<1x1x32xf32, #tpu.memory_space<vmem>>, vector<1x1x32xf32>
    %8 = vector.shape_cast %7 : vector<1x1x32xf32> to vector<1x32xf32>
    %cst = arith.constant dense<0.000000e+00> : vector<15xf32>
    %9 = vector.multi_reduction <add>, %3, %cst [1] : vector<15x32xf32> to vector<15xf32>
    %10 = vector.shape_cast %9 : vector<15xf32> to vector<15x1xf32>
    %cst_10 = arith.constant 3.200000e+01 : f32
    %11 = vector.broadcast %cst_10 : f32 to vector<15x1xf32>
    %12 = arith.divf %10, %11 : vector<15x1xf32>
    %13 = vector.broadcast %12 : vector<15x1xf32> to vector<15x32xf32>
    %14 = arith.subf %3, %13 : vector<15x32xf32>
    %15 = arith.mulf %14, %14 : vector<15x32xf32>
    %cst_11 = arith.constant dense<0.000000e+00> : vector<15xf32>
    %16 = vector.multi_reduction <add>, %15, %cst_11 [1] : vector<15x32xf32> to vector<15xf32>
    %17 = vector.shape_cast %16 : vector<15xf32> to vector<15x1xf32>
    %cst_12 = arith.constant 3.200000e+01 : f32
    %18 = vector.broadcast %cst_12 : f32 to vector<15x1xf32>
    %19 = arith.divf %17, %18 : vector<15x1xf32>
    %cst_13 = arith.constant 9.99999974E-6 : f32
    %20 = vector.broadcast %cst_13 : f32 to vector<15x1xf32>
    %21 = arith.addf %19, %20 : vector<15x1xf32>
    %22 = math.rsqrt %21 : vector<15x1xf32>
    %23 = vector.broadcast %22 : vector<15x1xf32> to vector<15x32xf32>
    %24 = arith.mulf %14, %23 : vector<15x32xf32>
    %25 = vector.broadcast %6 : vector<1x32xf32> to vector<15x32xf32>
    %26 = arith.mulf %24, %25 : vector<15x32xf32>
    %27 = vector.broadcast %8 : vector<1x32xf32> to vector<15x32xf32>
    %28 = arith.addf %26, %27 : vector<15x32xf32>
    %29 = arith.truncf %28 : vector<15x32xf32> to vector<15x32xbf16>
    %c0_14 = arith.constant 0 : index
    %c0_15 = arith.constant 0 : index
    %c0_16 = arith.constant 0 : index
    %30 = vector.load %arg9[%c0_14, %c0_15, %c0_16] : memref<1x32x96xbf16, #tpu.memory_space<vmem>>, vector<1x32x96xbf16>
    %31 = vector.shape_cast %30 : vector<1x32x96xbf16> to vector<32x96xbf16>
    %cst_17 = arith.constant dense<0.000000e+00> : vector<15x96xf32>
    %32 = tpu.matmul %29, %31, %cst_17 {dimension_numbers = #tpu.dot_dimension_numbers<[1], [0], [0], [1], [0, 0, 1, 1], [], []>} : vector<15x32xbf16>, vector<32x96xbf16>, vector<15x96xf32> -> vector<15x96xf32>
    %c0_18 = arith.constant 0 : index
    %c0_19 = arith.constant 0 : index
    %c0_20 = arith.constant 0 : index
    %33 = vector.load %arg10[%c0_18, %c0_19, %c0_20] : memref<1x1x96xf32, #tpu.memory_space<vmem>>, vector<1x1x96xf32>
    %34 = vector.shape_cast %33 : vector<1x1x96xf32> to vector<1x96xf32>
    %35 = vector.broadcast %34 : vector<1x96xf32> to vector<15x96xf32>
    %36 = arith.addf %32, %35 : vector<15x96xf32>
    %37 = arith.truncf %36 : vector<15x96xf32> to vector<15x96xbf16>
    %38 = vector.extract_strided_slice %37 {offsets = [0, 0], sizes = [15, 8], strides = [1, 1]} : vector<15x96xbf16> to vector<15x8xbf16>
    %39 = vector.extract_strided_slice %37 {offsets = [0, 32], sizes = [15, 8], strides = [1, 1]} : vector<15x96xbf16> to vector<15x8xbf16>
    %40 = vector.extract_strided_slice %37 {offsets = [0, 64], sizes = [15, 8], strides = [1, 1]} : vector<15x96xbf16> to vector<15x8xbf16>
    "tpu.trace_start"() <{level = 10 : i32, message = "qd,kd->qk"}> : () -> ()
    %cst_21 = arith.constant dense<0.000000e+00> : vector<15x15xf32>
    %41 = tpu.matmul %38, %39, %cst_21 {dimension_numbers = #tpu.dot_dimension_numbers<[1], [1], [0], [0], [0, 0, 1, 0], [], []>} : vector<15x8xbf16>, vector<15x8xbf16>, vector<15x15xf32> -> vector<15x15xf32>
    "tpu.trace_stop"() : () -> ()
    %42 = arith.addf %41, %4 : vector<15x15xf32>
    %cst_22 = arith.constant dense<0xFF800000> : vector<15xf32>
    %43 = vector.multi_reduction <maximumf>, %42, %cst_22 [1] : vector<15x15xf32> to vector<15xf32>
    %44 = vector.shape_cast %43 : vector<15xf32> to vector<15x1xf32>
    %45 = vector.broadcast %44 : vector<15x1xf32> to vector<15x15xf32>
    %46 = arith.subf %42, %45 : vector<15x15xf32>
    %47 = math.exp %46 : vector<15x15xf32>
    %cst_23 = arith.constant dense<0.000000e+00> : vector<15xf32>
    %48 = vector.multi_reduction <add>, %47, %cst_23 [1] : vector<15x15xf32> to vector<15xf32>
    %49 = vector.shape_cast %48 : vector<15xf32> to vector<15x1xf32>
    %50 = tpu.reciprocal %49 {approx = true} : vector<15x1xf32> -> vector<15x1xf32>
    %51 = vector.broadcast %50 : vector<15x1xf32> to vector<15x15xf32>
    %52 = arith.mulf %47, %51 : vector<15x15xf32>
    %53 = arith.truncf %52 : vector<15x15xf32> to vector<15x15xbf16>
    %cst_24 = arith.constant dense<0.000000e+00> : vector<15x8xf32>
    %54 = tpu.matmul %53, %40, %cst_24 {dimension_numbers = #tpu.dot_dimension_numbers<[1], [0], [0], [1], [0, 0, 1, 1], [], []>} : vector<15x15xbf16>, vector<15x8xbf16>, vector<15x8xf32> -> vector<15x8xf32>
    %55 = vector.extract_strided_slice %37 {offsets = [0, 8], sizes = [15, 8], strides = [1, 1]} : vector<15x96xbf16> to vector<15x8xbf16>
    %56 = vector.extract_strided_slice %37 {offsets = [0, 40], sizes = [15, 8], strides = [1, 1]} : vector<15x96xbf16> to vector<15x8xbf16>
    %57 = vector.extract_strided_slice %37 {offsets = [0, 72], sizes = [15, 8], strides = [1, 1]} : vector<15x96xbf16> to vector<15x8xbf16>
    "tpu.trace_start"() <{level = 10 : i32, message = "qd,kd->qk"}> : () -> ()
    %cst_25 = arith.constant dense<0.000000e+00> : vector<15x15xf32>
    %58 = tpu.matmul %55, %56, %cst_25 {dimension_numbers = #tpu.dot_dimension_numbers<[1], [1], [0], [0], [0, 0, 1, 0], [], []>} : vector<15x8xbf16>, vector<15x8xbf16>, vector<15x15xf32> -> vector<15x15xf32>
    "tpu.trace_stop"() : () -> ()
    %59 = arith.addf %58, %4 : vector<15x15xf32>
    %cst_26 = arith.constant dense<0xFF800000> : vector<15xf32>
    %60 = vector.multi_reduction <maximumf>, %59, %cst_26 [1] : vector<15x15xf32> to vector<15xf32>
    %61 = vector.shape_cast %60 : vector<15xf32> to vector<15x1xf32>
    %62 = vector.broadcast %61 : vector<15x1xf32> to vector<15x15xf32>
    %63 = arith.subf %59, %62 : vector<15x15xf32>
    %64 = math.exp %63 : vector<15x15xf32>
    %cst_27 = arith.constant dense<0.000000e+00> : vector<15xf32>
    %65 = vector.multi_reduction <add>, %64, %cst_27 [1] : vector<15x15xf32> to vector<15xf32>
    %66 = vector.shape_cast %65 : vector<15xf32> to vector<15x1xf32>
    %67 = tpu.reciprocal %66 {approx = true} : vector<15x1xf32> -> vector<15x1xf32>
    %68 = vector.broadcast %67 : vector<15x1xf32> to vector<15x15xf32>
    %69 = arith.mulf %64, %68 : vector<15x15xf32>
    %70 = arith.truncf %69 : vector<15x15xf32> to vector<15x15xbf16>
    %cst_28 = arith.constant dense<0.000000e+00> : vector<15x8xf32>
    %71 = tpu.matmul %70, %57, %cst_28 {dimension_numbers = #tpu.dot_dimension_numbers<[1], [0], [0], [1], [0, 0, 1, 1], [], []>} : vector<15x15xbf16>, vector<15x8xbf16>, vector<15x8xf32> -> vector<15x8xf32>
    %72 = vector.extract_strided_slice %37 {offsets = [0, 16], sizes = [15, 8], strides = [1, 1]} : vector<15x96xbf16> to vector<15x8xbf16>
    %73 = vector.extract_strided_slice %37 {offsets = [0, 48], sizes = [15, 8], strides = [1, 1]} : vector<15x96xbf16> to vector<15x8xbf16>
    %74 = vector.extract_strided_slice %37 {offsets = [0, 80], sizes = [15, 8], strides = [1, 1]} : vector<15x96xbf16> to vector<15x8xbf16>
    "tpu.trace_start"() <{level = 10 : i32, message = "qd,kd->qk"}> : () -> ()
    %cst_29 = arith.constant dense<0.000000e+00> : vector<15x15xf32>
    %75 = tpu.matmul %72, %73, %cst_29 {dimension_numbers = #tpu.dot_dimension_numbers<[1], [1], [0], [0], [0, 0, 1, 0], [], []>} : vector<15x8xbf16>, vector<15x8xbf16>, vector<15x15xf32> -> vector<15x15xf32>
    "tpu.trace_stop"() : () -> ()
    %76 = arith.addf %75, %4 : vector<15x15xf32>
    %cst_30 = arith.constant dense<0xFF800000> : vector<15xf32>
    %77 = vector.multi_reduction <maximumf>, %76, %cst_30 [1] : vector<15x15xf32> to vector<15xf32>
    %78 = vector.shape_cast %77 : vector<15xf32> to vector<15x1xf32>
    %79 = vector.broadcast %78 : vector<15x1xf32> to vector<15x15xf32>
    %80 = arith.subf %76, %79 : vector<15x15xf32>
    %81 = math.exp %80 : vector<15x15xf32>
    %cst_31 = arith.constant dense<0.000000e+00> : vector<15xf32>
    %82 = vector.multi_reduction <add>, %81, %cst_31 [1] : vector<15x15xf32> to vector<15xf32>
    %83 = vector.shape_cast %82 : vector<15xf32> to vector<15x1xf32>
    %84 = tpu.reciprocal %83 {approx = true} : vector<15x1xf32> -> vector<15x1xf32>
    %85 = vector.broadcast %84 : vector<15x1xf32> to vector<15x15xf32>
    %86 = arith.mulf %81, %85 : vector<15x15xf32>
    %87 = arith.truncf %86 : vector<15x15xf32> to vector<15x15xbf16>
    %cst_32 = arith.constant dense<0.000000e+00> : vector<15x8xf32>
    %88 = tpu.matmul %87, %74, %cst_32 {dimension_numbers = #tpu.dot_dimension_numbers<[1], [0], [0], [1], [0, 0, 1, 1], [], []>} : vector<15x15xbf16>, vector<15x8xbf16>, vector<15x8xf32> -> vector<15x8xf32>
    %89 = vector.extract_strided_slice %37 {offsets = [0, 24], sizes = [15, 8], strides = [1, 1]} : vector<15x96xbf16> to vector<15x8xbf16>
    %90 = vector.extract_strided_slice %37 {offsets = [0, 56], sizes = [15, 8], strides = [1, 1]} : vector<15x96xbf16> to vector<15x8xbf16>
    %91 = vector.extract_strided_slice %37 {offsets = [0, 88], sizes = [15, 8], strides = [1, 1]} : vector<15x96xbf16> to vector<15x8xbf16>
    "tpu.trace_start"() <{level = 10 : i32, message = "qd,kd->qk"}> : () -> ()
    %cst_33 = arith.constant dense<0.000000e+00> : vector<15x15xf32>
    %92 = tpu.matmul %89, %90, %cst_33 {dimension_numbers = #tpu.dot_dimension_numbers<[1], [1], [0], [0], [0, 0, 1, 0], [], []>} : vector<15x8xbf16>, vector<15x8xbf16>, vector<15x15xf32> -> vector<15x15xf32>
    "tpu.trace_stop"() : () -> ()
    %93 = arith.addf %92, %4 : vector<15x15xf32>
    %cst_34 = arith.constant dense<0xFF800000> : vector<15xf32>
    %94 = vector.multi_reduction <maximumf>, %93, %cst_34 [1] : vector<15x15xf32> to vector<15xf32>
    %95 = vector.shape_cast %94 : vector<15xf32> to vector<15x1xf32>
    %96 = vector.broadcast %95 : vector<15x1xf32> to vector<15x15xf32>
    %97 = arith.subf %93, %96 : vector<15x15xf32>
    %98 = math.exp %97 : vector<15x15xf32>
    %cst_35 = arith.constant dense<0.000000e+00> : vector<15xf32>
    %99 = vector.multi_reduction <add>, %98, %cst_35 [1] : vector<15x15xf32> to vector<15xf32>
    %100 = vector.shape_cast %99 : vector<15xf32> to vector<15x1xf32>
    %101 = tpu.reciprocal %100 {approx = true} : vector<15x1xf32> -> vector<15x1xf32>
    %102 = vector.broadcast %101 : vector<15x1xf32> to vector<15x15xf32>
    %103 = arith.mulf %98, %102 : vector<15x15xf32>
    %104 = arith.truncf %103 : vector<15x15xf32> to vector<15x15xbf16>
    %cst_36 = arith.constant dense<0.000000e+00> : vector<15x8xf32>
    %105 = tpu.matmul %104, %91, %cst_36 {dimension_numbers = #tpu.dot_dimension_numbers<[1], [0], [0], [1], [0, 0, 1, 1], [], []>} : vector<15x15xbf16>, vector<15x8xbf16>, vector<15x8xf32> -> vector<15x8xf32>
    %106 = tpu.concatenate %54, %71, %88, %105 in 1 : vector<15x8xf32>, vector<15x8xf32>, vector<15x8xf32>, vector<15x8xf32> -> vector<15x32xf32>
    %107 = arith.truncf %106 : vector<15x32xf32> to vector<15x32xbf16>
    %c0_37 = arith.constant 0 : index
    %c0_38 = arith.constant 0 : index
    %c0_39 = arith.constant 0 : index
    %108 = vector.load %arg11[%c0_37, %c0_38, %c0_39] : memref<1x32x32xbf16, #tpu.memory_space<vmem>>, vector<1x32x32xbf16>
    %109 = vector.shape_cast %108 : vector<1x32x32xbf16> to vector<32x32xbf16>
    %cst_40 = arith.constant dense<0.000000e+00> : vector<15x32xf32>
    %110 = tpu.matmul %107, %109, %cst_40 {dimension_numbers = #tpu.dot_dimension_numbers<[1], [0], [0], [1], [0, 0, 1, 1], [], []>} : vector<15x32xbf16>, vector<32x32xbf16>, vector<15x32xf32> -> vector<15x32xf32>
    %111 = arith.addf %3, %110 : vector<15x32xf32>
    %c0_41 = arith.constant 0 : index
    %c0_42 = arith.constant 0 : index
    %c0_43 = arith.constant 0 : index
    %112 = vector.load %arg12[%c0_41, %c0_42, %c0_43] : memref<1x1x32xf32, #tpu.memory_space<vmem>>, vector<1x1x32xf32>
    %113 = vector.shape_cast %112 : vector<1x1x32xf32> to vector<1x32xf32>
    %114 = vector.broadcast %113 : vector<1x32xf32> to vector<15x32xf32>
    %115 = arith.addf %111, %114 : vector<15x32xf32>
    %c0_44 = arith.constant 0 : index
    %c0_45 = arith.constant 0 : index
    %c0_46 = arith.constant 0 : index
    %116 = vector.load %arg13[%c0_44, %c0_45, %c0_46] : memref<1x1x32xf32, #tpu.memory_space<vmem>>, vector<1x1x32xf32>
    %117 = vector.shape_cast %116 : vector<1x1x32xf32> to vector<1x32xf32>
    %c0_47 = arith.constant 0 : index
    %c0_48 = arith.constant 0 : index
    %c0_49 = arith.constant 0 : index
    %118 = vector.load %arg14[%c0_47, %c0_48, %c0_49] : memref<1x1x32xf32, #tpu.memory_space<vmem>>, vector<1x1x32xf32>
    %119 = vector.shape_cast %118 : vector<1x1x32xf32> to vector<1x32xf32>
    %cst_50 = arith.constant dense<0.000000e+00> : vector<15xf32>
    %120 = vector.multi_reduction <add>, %115, %cst_50 [1] : vector<15x32xf32> to vector<15xf32>
    %121 = vector.shape_cast %120 : vector<15xf32> to vector<15x1xf32>
    %cst_51 = arith.constant 3.200000e+01 : f32
    %122 = vector.broadcast %cst_51 : f32 to vector<15x1xf32>
    %123 = arith.divf %121, %122 : vector<15x1xf32>
    %124 = vector.broadcast %123 : vector<15x1xf32> to vector<15x32xf32>
    %125 = arith.subf %115, %124 : vector<15x32xf32>
    %126 = arith.mulf %125, %125 : vector<15x32xf32>
    %cst_52 = arith.constant dense<0.000000e+00> : vector<15xf32>
    %127 = vector.multi_reduction <add>, %126, %cst_52 [1] : vector<15x32xf32> to vector<15xf32>
    %128 = vector.shape_cast %127 : vector<15xf32> to vector<15x1xf32>
    %cst_53 = arith.constant 3.200000e+01 : f32
    %129 = vector.broadcast %cst_53 : f32 to vector<15x1xf32>
    %130 = arith.divf %128, %129 : vector<15x1xf32>
    %cst_54 = arith.constant 9.99999974E-6 : f32
    %131 = vector.broadcast %cst_54 : f32 to vector<15x1xf32>
    %132 = arith.addf %130, %131 : vector<15x1xf32>
    %133 = math.rsqrt %132 : vector<15x1xf32>
    %134 = vector.broadcast %133 : vector<15x1xf32> to vector<15x32xf32>
    %135 = arith.mulf %125, %134 : vector<15x32xf32>
    %136 = vector.broadcast %117 : vector<1x32xf32> to vector<15x32xf32>
    %137 = arith.mulf %135, %136 : vector<15x32xf32>
    %138 = vector.broadcast %119 : vector<1x32xf32> to vector<15x32xf32>
    %139 = arith.addf %137, %138 : vector<15x32xf32>
    %140 = arith.truncf %139 : vector<15x32xf32> to vector<15x32xbf16>
    %c0_55 = arith.constant 0 : index
    %c0_56 = arith.constant 0 : index
    %c0_57 = arith.constant 0 : index
    %141 = vector.load %arg15[%c0_55, %c0_56, %c0_57] : memref<1x32x64xbf16, #tpu.memory_space<vmem>>, vector<1x32x64xbf16>
    %142 = vector.shape_cast %141 : vector<1x32x64xbf16> to vector<32x64xbf16>
    %cst_58 = arith.constant dense<0.000000e+00> : vector<15x64xf32>
    %143 = tpu.matmul %140, %142, %cst_58 {dimension_numbers = #tpu.dot_dimension_numbers<[1], [0], [0], [1], [0, 0, 1, 1], [], []>} : vector<15x32xbf16>, vector<32x64xbf16>, vector<15x64xf32> -> vector<15x64xf32>
    %c0_59 = arith.constant 0 : index
    %c0_60 = arith.constant 0 : index
    %c0_61 = arith.constant 0 : index
    %144 = vector.load %arg16[%c0_59, %c0_60, %c0_61] : memref<1x1x64xf32, #tpu.memory_space<vmem>>, vector<1x1x64xf32>
    %145 = vector.shape_cast %144 : vector<1x1x64xf32> to vector<1x64xf32>
    %146 = vector.broadcast %145 : vector<1x64xf32> to vector<15x64xf32>
    %147 = arith.addf %143, %146 : vector<15x64xf32>
    %cst_62 = arith.constant 1.702000e+00 : f32
    %148 = vector.broadcast %cst_62 : f32 to vector<15x64xf32>
    %149 = arith.mulf %148, %147 : vector<15x64xf32>
    %150 = arith.negf %149 : vector<15x64xf32>
    %151 = math.exp %150 : vector<15x64xf32>
    %cst_63 = arith.constant 1.000000e+00 : f32
    %152 = vector.broadcast %cst_63 : f32 to vector<15x64xf32>
    %153 = arith.addf %152, %151 : vector<15x64xf32>
    %154 = arith.divf %152, %153 : vector<15x64xf32>
    %155 = arith.mulf %147, %154 : vector<15x64xf32>
    %156 = arith.truncf %155 : vector<15x64xf32> to vector<15x64xbf16>
    %c0_64 = arith.constant 0 : index
    %c0_65 = arith.constant 0 : index
    %c0_66 = arith.constant 0 : index
    %157 = vector.load %arg17[%c0_64, %c0_65, %c0_66] : memref<1x64x32xbf16, #tpu.memory_space<vmem>>, vector<1x64x32xbf16>
    %158 = vector.shape_cast %157 : vector<1x64x32xbf16> to vector<64x32xbf16>
    %cst_67 = arith.constant dense<0.000000e+00> : vector<15x32xf32>
    %159 = tpu.matmul %156, %158, %cst_67 {dimension_numbers = #tpu.dot_dimension_numbers<[1], [0], [0], [1], [0, 0, 1, 1], [], []>} : vector<15x64xbf16>, vector<64x32xbf16>, vector<15x32xf32> -> vector<15x32xf32>
    %160 = arith.addf %115, %159 : vector<15x32xf32>
    %c0_68 = arith.constant 0 : index
    %c0_69 = arith.constant 0 : index
    %c0_70 = arith.constant 0 : index
    %161 = vector.load %arg18[%c0_68, %c0_69, %c0_70] : memref<1x1x32xf32, #tpu.memory_space<vmem>>, vector<1x1x32xf32>
    %162 = vector.shape_cast %161 : vector<1x1x32xf32> to vector<1x32xf32>
    %163 = vector.broadcast %162 : vector<1x32xf32> to vector<15x32xf32>
    %164 = arith.addf %160, %163 : vector<15x32xf32>
    %c0_71 = arith.constant 0 : index
    %c0_72 = arith.constant 0 : index
    %165 = vector.load %arg20[%c0_71, %c0_72] : memref<15x32xf32, #tpu.memory_space<vmem>>, vector<15x32xf32>
    tpu.vector_store %arg20[%c0_71, %c0_72], %164 {strides = array<i32>} : memref<15x32xf32, #tpu.memory_space<vmem>>, vector<15x32xf32>,
    %c0_i32_73 = arith.constant 0 : i32
    %166 = arith.cmpi eq, %arg0, %c0_i32_73 : i32
    %167 = arith.extui %166 : i1 to i32
    %c0_i32_74 = arith.constant 0 : i32
    %168 = arith.cmpi ne, %167, %c0_i32_74 : i32
    scf.if %168 {
      %c0_75 = arith.constant 0 : index
      %c0_76 = arith.constant 0 : index
      %169 = vector.load %arg19[%c0_75, %c0_76] : memref<15x32xf32, #tpu.memory_space<vmem>>, vector<15x32xf32>
      tpu.vector_store %arg19[%c0_75, %c0_76], %164 {strides = array<i32>} : memref<15x32xf32, #tpu.memory_space<vmem>>, vector<15x32xf32>,
    } else {
    }
    return
  }
  func.func @transform_0(%arg0: i32) -> (i32, i32) {
    %c0_i32 = arith.constant 0 : i32
    %c0_i32_0 = arith.constant 0 : i32
    %c0_i32_1 = arith.constant 0 : i32
    return %c0_i32, %c0_i32_0 : i32, i32
  }
  func.func @transform_1(%arg0: i32) -> (i32, i32) {
    %c0_i32 = arith.constant 0 : i32
    %c0_i32_0 = arith.constant 0 : i32
    %c0_i32_1 = arith.constant 0 : i32
    return %c0_i32, %c0_i32_0 : i32, i32
  }
  func.func @transform_2(%arg0: i32) -> (i32, i32) {
    %c0_i32 = arith.constant 0 : i32
    %c0_i32_0 = arith.constant 0 : i32
    %c0_i32_1 = arith.constant 0 : i32
    return %c0_i32, %c0_i32_0 : i32, i32
  }
  func.func @transform_3(%arg0: i32) -> (i32, i32) {
    %c0_i32 = arith.constant 0 : i32
    %c0_i32_0 = arith.constant 0 : i32
    %c0_i32_1 = arith.constant 0 : i32
    return %c0_i32, %c0_i32_0 : i32, i32
  }
  func.func @transform_4(%arg0: i32) -> (i32, i32) {
    %c0_i32 = arith.constant 0 : i32
    %c0_i32_0 = arith.constant 0 : i32
    %c0_i32_1 = arith.constant 0 : i32
    return %c0_i32, %c0_i32_0 : i32, i32
  }
  func.func @transform_5(%arg0: i32) -> (i32, i32) {
    %c0_i32 = arith.constant 0 : i32
    %c0_i32_0 = arith.constant 0 : i32
    %c0_i32_1 = arith.constant 0 : i32
    return %c0_i32, %c0_i32_0 : i32, i32
  }
  func.func @transform_6(%arg0: i32) -> (i32, i32, i32) {
    %c0_i32 = arith.constant 0 : i32
    %c0_i32_0 = arith.constant 0 : i32
    %c0_i32_1 = arith.constant 0 : i32
    return %arg0, %c0_i32, %c0_i32_0 : i32, i32, i32
  }
  func.func @transform_7(%arg0: i32) -> (i32, i32, i32) {
    %c0_i32 = arith.constant 0 : i32
    %c0_i32_0 = arith.constant 0 : i32
    %c0_i32_1 = arith.constant 0 : i32
    return %arg0, %c0_i32, %c0_i32_0 : i32, i32, i32
  }
  func.func @transform_8(%arg0: i32) -> (i32, i32, i32) {
    %c0_i32 = arith.constant 0 : i32
    %c0_i32_0 = arith.constant 0 : i32
    %c0_i32_1 = arith.constant 0 : i32
    return %arg0, %c0_i32, %c0_i32_0 : i32, i32, i32
  }
  func.func @transform_9(%arg0: i32) -> (i32, i32, i32) {
    %c0_i32 = arith.constant 0 : i32
    %c0_i32_0 = arith.constant 0 : i32
    %c0_i32_1 = arith.constant 0 : i32
    return %arg0, %c0_i32, %c0_i32_0 : i32, i32, i32
  }
  func.func @transform_10(%arg0: i32) -> (i32, i32, i32) {
    %c0_i32 = arith.constant 0 : i32
    %c0_i32_0 = arith.constant 0 : i32
    %c0_i32_1 = arith.constant 0 : i32
    return %arg0, %c0_i32, %c0_i32_0 : i32, i32, i32
  }
  func.func @transform_11(%arg0: i32) -> (i32, i32, i32) {
    %c0_i32 = arith.constant 0 : i32
    %c0_i32_0 = arith.constant 0 : i32
    %c0_i32_1 = arith.constant 0 : i32
    return %arg0, %c0_i32, %c0_i32_0 : i32, i32, i32
  }
  func.func @transform_12(%arg0: i32) -> (i32, i32, i32) {
    %c0_i32 = arith.constant 0 : i32
    %c0_i32_0 = arith.constant 0 : i32
    %c0_i32_1 = arith.constant 0 : i32
    return %arg0, %c0_i32, %c0_i32_0 : i32, i32, i32
  }
  func.func @transform_13(%arg0: i32) -> (i32, i32, i32) {
    %c0_i32 = arith.constant 0 : i32
    %c0_i32_0 = arith.constant 0 : i32
    %c0_i32_1 = arith.constant 0 : i32
    return %arg0, %c0_i32, %c0_i32_0 : i32, i32, i32
  }
  func.func @transform_14(%arg0: i32) -> (i32, i32, i32) {
    %c0_i32 = arith.constant 0 : i32
    %c0_i32_0 = arith.constant 0 : i32
    %c0_i32_1 = arith.constant 0 : i32
    return %arg0, %c0_i32, %c0_i32_0 : i32, i32, i32
  }
  func.func @transform_15(%arg0: i32) -> (i32, i32, i32) {
    %c0_i32 = arith.constant 0 : i32
    %c0_i32_0 = arith.constant 0 : i32
    %c0_i32_1 = arith.constant 0 : i32
    return %arg0, %c0_i32, %c0_i32_0 : i32, i32, i32
  }
  func.func @transform_16(%arg0: i32) -> (i32, i32, i32) {
    %c0_i32 = arith.constant 0 : i32
    %c0_i32_0 = arith.constant 0 : i32
    %c0_i32_1 = arith.constant 0 : i32
    return %arg0, %c0_i32, %c0_i32_0 : i32, i32, i32
  }
  func.func @transform_17(%arg0: i32) -> (i32, i32, i32) {
    %c0_i32 = arith.constant 0 : i32
    %c0_i32_0 = arith.constant 0 : i32
    %c0_i32_1 = arith.constant 0 : i32
    return %arg0, %c0_i32, %c0_i32_0 : i32, i32, i32
  }
  func.func @transform_18(%arg0: i32) -> (i32, i32) {
    %c0_i32 = arith.constant 0 : i32
    %c0_i32_0 = arith.constant 0 : i32
    %c0_i32_1 = arith.constant 0 : i32
    return %c0_i32, %c0_i32_0 : i32, i32
  }
}

</mosaic_0001>

<llo_original>
// kernel: tile.9
$region0: #{tile.9}
  %s0 = inlined_call_operand.vmem [shape: f32[3,5,32], index: 0, kind: input, shape index: {}]
  %s1 = inlined_call_operand.vmem [shape: f32[15,32], index: 1, kind: output, shape index: {}]
  %v2 = vld [vmem:[%s0] sm:$0x1f]
  %vm3 = vcmask 261120
  %4 = vst.msk [vmem:[%s1] sm:$0x1f] %vm3, %v2
  %s5 = scalar_lea.vmem %s0, 8
  %v6 = vld [vmem:[%s5] sm:$0x1f]
  %vm7 = vcmask 261120
  %s8 = scalar_lea.vmem %s1, 5
  %9 = vst.msk [vmem:[%s8] sm:$0x1f] %vm7, %v6
  %s10 = scalar_lea.vmem %s0, 16
  %v11 = vld [vmem:[%s10] sm:$0x1f]
  %vm12 = vcmask 261120
  %s13 = scalar_lea.vmem %s1, 10
  %14 = vst.msk [vmem:[%s13] sm:$0x1f] %vm12, %v11

// kernel: eq.8
$region0: #{eq.8}
  %s0 = inlined_call_operand.vmem [shape: s32[3,5], index: 0, kind: input, shape index: {}]
  %s1 = inlined_call_operand.vmem [shape: s32[15], index: 1, kind: output, shape index: {}]
  $region1: #{eq.8} parent=0
    #allocation0 [shape = 'u8[4096]{0}', space=vmem, size = 0x1000, scoped, tag = 'scoped mem for output reshape']
    #allocation1 [shape = 'u8[4096]{0}', space=vmem, size = 0x1000, scoped, tag = 'scoped mem for input reshape']
    %s3 = sshllo.u32 0, 4
    %v4 = vld [vmem:[%s0] sm:%s3]
    %5 = vst [vmem:[#allocation1] sm:%s3] %v4
    %v6 = vld [vmem:[#allocation1] sm:$0x1]
    %vm7 = vcmask 39936
    %8 = vst.msk [vmem:[#allocation0] sm:$0x1] %vm7, %v6
    %s9 = scalar_lea.vmem [#allocation1], 2
    %v10 = vld [vmem:[%s9] sm:$0x1]
    %11 = vrot.lane.b32.xlu0 %v10, 10
    %v12 = vpop.permute.xlu0 %11
    %vm13 = vcmask 121936
    %14 = vst.msk [vmem:[#allocation0] sm:$0x1] %vm13, %v12
    %s15 = scalar_lea.vmem [#allocation1], 1
    %v16 = vld [vmem:[%s15] sm:$0x1]
    %17 = vrot.lane.b32.xlu0 %v16, 5
    %v18 = vpop.permute.xlu0 %17
    %vm19 = vcmask 80936
    %20 = vst.msk [vmem:[#allocation0] sm:$0x1] %vm19, %v18
    %s22 = sshllo.u32 0, 1
    %v24 = vld [vmem:[#allocation0] sm:%s22]
    %s25 = sshllo.u32 0, 1
    %26 = vst [vmem:[%s1] sm:%s25] %v24

// kernel: _tower_features.1
$region0: #{_tower_features.1}
  #allocation0 [shape = 'u32[]', space=smem, size = 0x4, offset = 0x4, fixed_abs, tag = 'smem constant byte address 0x4 - core index']
  #allocation1 [shape = 'u32[144,128]{1,0:T(1,128)}', space=vmem, size = 0x12000, scoped, tag = 'internal scratch']
  #allocation2 [shape = 'f32[15,32]{1,0:T(8,128)}', space=vmem, size = 0x2000, scoped, tag = 'scratch operand']
  %s0 = inlined_call_operand.vmem [shape: bf16[15,256], index: 0, kind: input, shape index: {}]
  %s1 = inlined_call_operand.vmem [shape: bf16[256,32], index: 1, kind: input, shape index: {}]
  %s2 = inlined_call_operand.vmem [shape: f32[15,32], index: 2, kind: input, shape index: {}]
  %s3 = inlined_call_operand.vmem [shape: f32[15,15], index: 3, kind: input, shape index: {}]
  %s4 = inlined_call_operand.vmem [shape: f32[1,32], index: 4, kind: input, shape index: {}]
  %s5 = inlined_call_operand.vmem [shape: f32[1,32], index: 5, kind: input, shape index: {}]
  %s6 = inlined_call_operand.vmem [shape: f32[1,1,32], index: 6, kind: input, shape index: {}]
  %s7 = inlined_call_operand.vmem [shape: f32[1,1,32], index: 7, kind: input, shape index: {}]
  %s8 = inlined_call_operand.vmem [shape: bf16[1,32,96], index: 8, kind: input, shape index: {}]
  %s9 = inlined_call_operand.vmem [shape: f32[1,1,96], index: 9, kind: input, shape index: {}]
  %s10 = inlined_call_operand.vmem [shape: bf16[1,32,32], index: 10, kind: input, shape index: {}]
  %s11 = inlined_call_operand.vmem [shape: f32[1,1,32], index: 11, kind: input, shape index: {}]
  %s12 = inlined_call_operand.vmem [shape: f32[1,1,32], index: 12, kind: input, shape index: {}]
  %s13 = inlined_call_operand.vmem [shape: f32[1,1,32], index: 13, kind: input, shape index: {}]
  %s14 = inlined_call_operand.vmem [shape: bf16[1,32,64], index: 14, kind: input, shape index: {}]
  %s15 = inlined_call_operand.vmem [shape: f32[1,1,64], index: 15, kind: input, shape index: {}]
  %s16 = inlined_call_operand.vmem [shape: bf16[1,64,32], index: 16, kind: input, shape index: {}]
  %s17 = inlined_call_operand.vmem [shape: f32[1,1,32], index: 17, kind: input, shape index: {}]
  %s18 = inlined_call_operand.vmem [shape: f32[15,32], index: 18, kind: output, shape index: {}]
  %s19 = sld [smem:[#allocation0]]
  $region90: #{_tower_features.1} parent=0
    _
  %s21 = ssub.s32 1, %s19
  %s22 = scalar_select 0, %s21, %s19
  // Predicated region
  $region2: #{_tower_features.1} parent=0 // pred_check
    _
  $region3: #{_tower_features.1} parent=0 // pred_check_branch
    %24 = sbr.rel (0) target = $region5
  $region4: #{_tower_features.1} parent=0 // pred_region
    _
  $region5: #{_tower_features.1} parent=0 // pred_fallthru
    _
  // Predicated region
  $region6: #{_tower_features.1} parent=0 // pred_check
    _
  $region7: #{_tower_features.1} parent=0 // pred_check_branch
    %26 = sbr.rel (0) target = $region9
  $region8: #{_tower_features.1} parent=0 // pred_region
    _
  $region9: #{_tower_features.1} parent=0 // pred_fallthru
    _
  // Predicated region
  $region10: #{_tower_features.1} parent=0 // pred_check
    _
  $region11: #{_tower_features.1} parent=0 // pred_check_branch
    %28 = sbr.rel (0) target = $region13
  $region12: #{_tower_features.1} parent=0 // pred_region
    _
  $region13: #{_tower_features.1} parent=0 // pred_fallthru
    _
  // Predicated region
  $region14: #{_tower_features.1} parent=0 // pred_check
    _
  $region15: #{_tower_features.1} parent=0 // pred_check_branch
    %30 = sbr.rel (0) target = $region17
  $region16: #{_tower_features.1} parent=0 // pred_region
    _
  $region17: #{_tower_features.1} parent=0 // pred_fallthru
    _
  // Predicated region
  $region18: #{_tower_features.1} parent=0 // pred_check
    _
  $region19: #{_tower_features.1} parent=0 // pred_check_branch
    %32 = sbr.rel (0) target = $region21
  $region20: #{_tower_features.1} parent=0 // pred_region
    _
  $region21: #{_tower_features.1} parent=0 // pred_fallthru
    _
  // Predicated region
  $region22: #{_tower_features.1} parent=0 // pred_check
    _
  $region23: #{_tower_features.1} parent=0 // pred_check_branch
    %34 = sbr.rel (0) target = $region25
  $region24: #{_tower_features.1} parent=0 // pred_region
    _
  $region25: #{_tower_features.1} parent=0 // pred_fallthru
    _
  // Predicated region
  $region26: #{_tower_features.1} parent=0 // pred_check
    _
  $region27: #{_tower_features.1} parent=0 // pred_check_branch
    %36 = sbr.rel (0) target = $region29
  $region28: #{_tower_features.1} parent=0 // pred_region
    _
  $region29: #{_tower_features.1} parent=0 // pred_fallthru
    _
  // Predicated region
  $region30: #{_tower_features.1} parent=0 // pred_check
    _
  $region31: #{_tower_features.1} parent=0 // pred_check_branch
    %38 = sbr.rel (0) target = $region33
  $region32: #{_tower_features.1} parent=0 // pred_region
    _
  $region33: #{_tower_features.1} parent=0 // pred_fallthru
    _
  // Predicated region
  $region34: #{_tower_features.1} parent=0 // pred_check
    _
  $region35: #{_tower_features.1} parent=0 // pred_check_branch
    %40 = sbr.rel (0) target = $region37
  $region36: #{_tower_features.1} parent=0 // pred_region
    _
  $region37: #{_tower_features.1} parent=0 // pred_fallthru
    _
  // Predicated region
  $region38: #{_tower_features.1} parent=0 // pred_check
    _
  $region39: #{_tower_features.1} parent=0 // pred_check_branch
    %42 = sbr.rel (0) target = $region41
  $region40: #{_tower_features.1} parent=0 // pred_region
    _
  $region41: #{_tower_features.1} parent=0 // pred_fallthru
    _
  // Predicated region
  $region42: #{_tower_features.1} parent=0 // pred_check
    _
  $region43: #{_tower_features.1} parent=0 // pred_check_branch
    %44 = sbr.rel (0) target = $region45
  $region44: #{_tower_features.1} parent=0 // pred_region
    _
  $region45: #{_tower_features.1} parent=0 // pred_fallthru
    _
  // Predicated region
  $region46: #{_tower_features.1} parent=0 // pred_check
    _
  $region47: #{_tower_features.1} parent=0 // pred_check_branch
    %46 = sbr.rel (0) target = $region49
  $region48: #{_tower_features.1} parent=0 // pred_region
    _
  $region49: #{_tower_features.1} parent=0 // pred_fallthru
    _
  // Predicated region
  $region50: #{_tower_features.1} parent=0 // pred_check
    _
  $region51: #{_tower_features.1} parent=0 // pred_check_branch
    %48 = sbr.rel (0) target = $region53
  $region52: #{_tower_features.1} parent=0 // pred_region
    _
  $region53: #{_tower_features.1} parent=0 // pred_fallthru
    _
  // Predicated region
  $region54: #{_tower_features.1} parent=0 // pred_check
    _
  $region55: #{_tower_features.1} parent=0 // pred_check_branch
    %50 = sbr.rel (0) target = $region57
  $region56: #{_tower_features.1} parent=0 // pred_region
    _
  $region57: #{_tower_features.1} parent=0 // pred_fallthru
    _
  // Predicated region
  $region58: #{_tower_features.1} parent=0 // pred_check
    _
  $region59: #{_tower_features.1} parent=0 // pred_check_branch
    %52 = sbr.rel (0) target = $region61
  $region60: #{_tower_features.1} parent=0 // pred_region
    _
  $region61: #{_tower_features.1} parent=0 // pred_fallthru
    _
  // Predicated region
  $region62: #{_tower_features.1} parent=0 // pred_check
    _
  $region63: #{_tower_features.1} parent=0 // pred_check_branch
    %54 = sbr.rel (0) target = $region65
  $region64: #{_tower_features.1} parent=0 // pred_region
    _
  $region65: #{_tower_features.1} parent=0 // pred_fallthru
    _
  // Predicated region
  $region66: #{_tower_features.1} parent=0 // pred_check
    _
  $region67: #{_tower_features.1} parent=0 // pred_check_branch
    %56 = sbr.rel (0) target = $region69
  $region68: #{_tower_features.1} parent=0 // pred_region
    _
  $region69: #{_tower_features.1} parent=0 // pred_fallthru
    _
  // Predicated region
  $region70: #{_tower_features.1} parent=0 // pred_check
    _
  $region71: #{_tower_features.1} parent=0 // pred_check_branch
    %58 = sbr.rel (0) target = $region73
  $region72: #{_tower_features.1} parent=0 // pred_region
    _
  $region73: #{_tower_features.1} parent=0 // pred_fallthru
    _
  %p60 = scmp.eq.s32.totalorder 0, 0
  // Predicated region
  $region74: #{_tower_features.1} parent=0 // pred_check
    %p61 = pneg %p60
  $region75: #{_tower_features.1} parent=0 // pred_check_branch
    %63 = sbr.rel (%p61) target = $region77
  $region76: #{_tower_features.1} parent=0 // pred_region
    %v64 = vld [vmem:[%s0] sm:$0xff]
    %v65 = vld [vmem:[%s0 + $0x8] sm:$0xff]
    %v66 = vld [vmem:[%s1] sm:$0xf]
    %v67 = vld [vmem:[%s1 + $0x4] sm:$0xf]
    %v68 = vld [vmem:[%s1 + $0x8] sm:$0xf]
    %v69 = vld [vmem:[%s1 + $0xc] sm:$0xf]
    %v70 = vld [vmem:[%s1 + $0x10] sm:$0xf]
    %v71 = vld [vmem:[%s1 + $0x14] sm:$0xf]
    %v72 = vld [vmem:[%s1 + $0x18] sm:$0xf]
    %v73 = vld [vmem:[%s1 + $0x1c] sm:$0xf]
    %v74 = vld [vmem:[%s1 + $0x20] sm:$0xf]
    %v75 = vld [vmem:[%s1 + $0x24] sm:$0xf]
    %v76 = vld [vmem:[%s1 + $0x28] sm:$0xf]
    %v77 = vld [vmem:[%s1 + $0x2c] sm:$0xf]
    %v78 = vld [vmem:[%s1 + $0x30] sm:$0xf]
    %v79 = vld [vmem:[%s1 + $0x34] sm:$0xf]
    %v80 = vld [vmem:[%s1 + $0x38] sm:$0xf]
    %v81 = vld [vmem:[%s1 + $0x3c] sm:$0xf]
    %v82 = vld [vmem:[%s1 + $0x40] sm:$0xf]
    %v83 = vld [vmem:[%s1 + $0x44] sm:$0xf]
    %v84 = vld [vmem:[%s1 + $0x48] sm:$0xf]
    %v85 = vld [vmem:[%s1 + $0x4c] sm:$0xf]
    %v86 = vld [vmem:[%s1 + $0x50] sm:$0xf]
    %v87 = vld [vmem:[%s1 + $0x54] sm:$0xf]
    %v88 = vld [vmem:[%s1 + $0x58] sm:$0xf]
    %v89 = vld [vmem:[%s1 + $0x5c] sm:$0xf]
    %v90 = vld [vmem:[%s1 + $0x60] sm:$0xf]
    %v91 = vld [vmem:[%s1 + $0x64] sm:$0xf]
    %v92 = vld [vmem:[%s1 + $0x68] sm:$0xf]
    %v93 = vld [vmem:[%s1 + $0x6c] sm:$0xf]
    %v94 = vld [vmem:[%s1 + $0x70] sm:$0xf]
    %v95 = vld [vmem:[%s1 + $0x74] sm:$0xf]
    %v96 = vld [vmem:[%s1 + $0x78] sm:$0xf]
    %v97 = vld [vmem:[%s1 + $0x7c] sm:$0xf]
    %v98 = vld [vmem:[%s2] sm:$0xff]
    %v99 = vld [vmem:[%s2 + $0x8] sm:$0x7f]
    %v102 = vunpack.c.l.b16 %v64
    %v103 = vunpack.c.h.b16 %v64
    %v104 = vunpack.c.l.b16 %v65
    %v105 = vunpack.c.h.b16 %v65
    %v106 = vpack.c.b16 %v104, %v102
    %v107 = vpack.c.b16 %v105, %v103
    %v142 = vunpack.c.l.b16 %v66
    %v143 = vunpack.c.l.b16 %v67
    %v144 = vunpack.c.l.b16 %v68
    %v145 = vunpack.c.l.b16 %v69
    %v146 = vunpack.c.l.b16 %v70
    %v147 = vunpack.c.l.b16 %v71
    %v148 = vunpack.c.l.b16 %v72
    %v149 = vunpack.c.l.b16 %v73
    %v150 = vunpack.c.l.b16 %v74
    %v151 = vunpack.c.l.b16 %v75
    %v152 = vunpack.c.l.b16 %v76
    %v153 = vunpack.c.l.b16 %v77
    %v154 = vunpack.c.l.b16 %v78
    %v155 = vunpack.c.l.b16 %v79
    %v156 = vunpack.c.l.b16 %v80
    %v157 = vunpack.c.l.b16 %v81
    %v158 = vunpack.c.l.b16 %v82
    %v159 = vunpack.c.l.b16 %v83
    %v160 = vunpack.c.l.b16 %v84
    %v161 = vunpack.c.l.b16 %v85
    %v162 = vunpack.c.l.b16 %v86
    %v163 = vunpack.c.l.b16 %v87
    %v164 = vunpack.c.l.b16 %v88
    %v165 = vunpack.c.l.b16 %v89
    %v166 = vunpack.c.l.b16 %v90
    %v167 = vunpack.c.l.b16 %v91
    %v168 = vunpack.c.l.b16 %v92
    %v169 = vunpack.c.l.b16 %v93
    %v170 = vunpack.c.l.b16 %v94
    %v171 = vunpack.c.l.b16 %v95
    %v172 = vunpack.c.l.b16 %v96
    %v173 = vunpack.c.l.b16 %v97
    %v174 = vpack.c.b16 %v143, %v142
    %v175 = vpack.c.b16 %v145, %v144
    %v176 = vpack.c.b16 %v147, %v146
    %v177 = vpack.c.b16 %v149, %v148
    %v178 = vpack.c.b16 %v151, %v150
    %v179 = vpack.c.b16 %v153, %v152
    %v180 = vpack.c.b16 %v155, %v154
    %v181 = vpack.c.b16 %v157, %v156
    %v182 = vpack.c.b16 %v159, %v158
    %v183 = vpack.c.b16 %v161, %v160
    %v184 = vpack.c.b16 %v163, %v162
    %v185 = vpack.c.b16 %v165, %v164
    %v186 = vpack.c.b16 %v167, %v166
    %v187 = vpack.c.b16 %v169, %v168
    %v188 = vpack.c.b16 %v171, %v170
    %v189 = vpack.c.b16 %v173, %v172
    %206 = vmatprep.subr.bf16.mxu0 0
    %207 = vmatpush1.bf16.msra.mxu0 %v174
    %208 = vmatprep.subr.bf16.mxu0 0
    %209 = vmatpush1.bf16.msra.mxu0 %v175
    %210 = vmatprep.subr.bf16.mxu0 0
    %211 = vmatpush1.bf16.msra.mxu0 %v176
    %212 = vmatprep.subr.bf16.mxu0 0
    %213 = vmatpush1.bf16.msra.mxu0 %v177
    %214 = vmatprep.subr.bf16.mxu0 0
    %215 = vmatpush1.bf16.msra.mxu0 %v178
    %216 = vmatprep.subr.bf16.mxu0 0
    %217 = vmatpush1.bf16.msra.mxu0 %v179
    %218 = vmatprep.subr.bf16.mxu0 0
    %219 = vmatpush1.bf16.msra.mxu0 %v180
    %220 = vmatprep.subr.bf16.mxu0 0
    %221 = vmatpush1.bf16.msra.mxu0 %v181
    %222 = vmatprep.subr.bf16.mxu0 0
    %223 = vmatpush1.bf16.msra.mxu0 %v182
    %224 = vmatprep.subr.bf16.mxu0 0
    %225 = vmatpush1.bf16.msra.mxu0 %v183
    %226 = vmatprep.subr.bf16.mxu0 0
    %227 = vmatpush1.bf16.msra.mxu0 %v184
    %228 = vmatprep.subr.bf16.mxu0 0
    %229 = vmatpush1.bf16.msra.mxu0 %v185
    %230 = vmatprep.subr.bf16.mxu0 0
    %231 = vmatpush1.bf16.msra.mxu0 %v186
    %232 = vmatprep.subr.bf16.mxu0 0
    %233 = vmatpush1.bf16.msra.mxu0 %v187
    %234 = vmatprep.subr.bf16.mxu0 0
    %235 = vmatpush1.bf16.msra.mxu0 %v188
    %236 = vmatprep.subr.bf16.mxu0 0
    %237 = vmatpush1.bf16.msra.mxu0 %v189
    %238 = vmatprep.mubr.bf16.mxu0 %v107
    %239 = vmatmul.mubr.bf16.gmra.mrb[0].mxu0 %v106
    %v240 = vpop.f32.mrb[0].mxu0
    %v241 = vadd.f32 %v98, %v240
    %v242 = vpop.f32.mrb[0].mxu0
    %v243 = vpop.f32.mrb[0].mxu0
    %v244 = vadd.f32 %v99, %v243
    %v245 = vpop.f32.mrb[0].mxu0
    %246 = vdwg.mxu0
    %v247 = vld [vmem:[%s4] sm:$0x1]
    %v248 = vld [vmem:[%s5] sm:$0x1]
    %vm249 = vcmask 261120
    %v250 = vsel %vm249, %v241, 0.0
    %251 = vadd.xlane.f32.xlu0 %v250
    %v252 = vpop.xlane.xlu0 %251
    %vm253 = vcmask 260096
    %v254 = vsel %vm253, %v244, 0.0
    %255 = vadd.xlane.f32.xlu0 %v254
    %v256 = vpop.xlane.xlu0 %255
    %v257 = vrcp.pop 32.0
    %v258 = vmul.f32 %v252, %v257
    %v259 = vmul.f32 %v256, %v257
    %v260 = vsub.f32 %v241, %v258
    %v261 = vsub.f32 %v244, %v259
    %v262 = vmul.f32 %v260, %v260
    %v263 = vmul.f32 %v261, %v261
    %v264 = vsel %vm249, %v262, 0.0
    %265 = vadd.xlane.f32.xlu0 %v264
    %v266 = vpop.xlane.xlu0 %265
    %v267 = vsel %vm253, %v263, 0.0
    %268 = vadd.xlane.f32.xlu0 %v267
    %v269 = vpop.xlane.xlu0 %268
    %v270 = vmul.f32 %v266, %v257
    %v271 = vmul.f32 %v269, %v257
    %v272 = vadd.f32 %v270, 1e-05
    %v273 = vadd.f32 %v271, 1e-05
    %v274 = vrsqrt.pop %v272
    %v275 = vrsqrt.pop %v273
    %v276 = vmul.f32 %v260, %v274
    %v277 = vmul.f32 %v261, %v275
    %v279 = vlaneseq
    %v280 = vshrl.u32 %v279, 7
    %v281 = vsub.s32 0, %v280
    %v282 = vrot.slane %v247, %v281
    %v284 = vmul.f32 %v276, %v282
    %v285 = vmul.f32 %v277, %v282
    %v287 = vlaneseq
    %v288 = vshrl.u32 %v287, 7
    %v289 = vsub.s32 0, %v288
    %v290 = vrot.slane %v248, %v289
    %v292 = vadd.f32 %v284, %v290
    %v293 = vadd.f32 %v285, %v290
    %294 = vst.msk [vmem:[#allocation2] sm:$0xff] %vm249, %v292
    %295 = vst.msk [vmem:[#allocation2 + $0x8] sm:$0x7f] %vm253, %v293
  $region77: #{_tower_features.1} parent=0 // pred_fallthru
    _
  %v296 = vld [vmem:[#allocation2] sm:$0xff]
  %v297 = vld [vmem:[#allocation2 + $0x8] sm:$0x7f]
  %v298 = vld [vmem:[%s3] sm:$0xff]
  %v299 = vld [vmem:[%s3 + $0x8] sm:$0x7f]
  %v300 = vld [vmem:[%s6] sm:$0x1]
  %v301 = vld [vmem:[%s7] sm:$0x1]
  %vm302 = vcmask 261120
  %v303 = vsel %vm302, %v296, 0.0
  %304 = vadd.xlane.f32.xlu0 %v303
  %v305 = vpop.xlane.xlu0 %304
  %vm306 = vcmask 260096
  %v307 = vsel %vm306, %v297, 0.0
  %308 = vadd.xlane.f32.xlu0 %v307
  %v309 = vpop.xlane.xlu0 %308
  %v310 = vrcp.pop 32.0
  %v311 = vmul.f32 %v305, %v310
  %v312 = vmul.f32 %v309, %v310
  %v313 = vsub.f32 %v296, %v311
  %v314 = vsub.f32 %v297, %v312
  %v315 = vmul.f32 %v313, %v313
  %v316 = vmul.f32 %v314, %v314
  %v317 = vsel %vm302, %v315, 0.0
  %318 = vadd.xlane.f32.xlu0 %v317
  %v319 = vpop.xlane.xlu0 %318
  %v320 = vsel %vm306, %v316, 0.0
  %321 = vadd.xlane.f32.xlu0 %v320
  %v322 = vpop.xlane.xlu0 %321
  %v323 = vmul.f32 %v319, %v310
  %v324 = vmul.f32 %v322, %v310
  %v325 = vadd.f32 %v323, 1e-05
  %v326 = vadd.f32 %v324, 1e-05
  %v327 = vrsqrt.pop %v325
  %v328 = vrsqrt.pop %v326
  %v329 = vmul.f32 %v313, %v327
  %v330 = vmul.f32 %v314, %v328
  %v332 = vlaneseq
  %v333 = vshrl.u32 %v332, 7
  %v334 = vsub.s32 0, %v333
  %v335 = vrot.slane %v300, %v334
  %v337 = vmul.f32 %v329, %v335
  %v338 = vmul.f32 %v330, %v335
  %v340 = vlaneseq
  %v341 = vshrl.u32 %v340, 7
  %v342 = vsub.s32 0, %v341
  %v343 = vrot.slane %v301, %v342
  %v345 = vadd.f32 %v337, %v343
  %v346 = vadd.f32 %v338, %v343
  %v347 = vpack.c.bf16 %v346, %v345
  %v348 = vld [vmem:[%s8] sm:$0xf]
  %v349 = vld [vmem:[%s8 + $0x4] sm:$0xf]
  %v350 = vld [vmem:[%s8 + $0x8] sm:$0xf]
  %v351 = vld [vmem:[%s8 + $0xc] sm:$0xf]
  %v352 = vld [vmem:[%s9] sm:$0x1]
  %v354 = vlaneseq
  %v355 = vshrl.u32 %v354, 7
  %v356 = vsub.s32 0, %v355
  %v357 = vrot.slane %v352, %v356
  %v363 = vunpack.c.l.b16 %v348
  %v364 = vunpack.c.l.b16 %v349
  %v365 = vunpack.c.l.b16 %v350
  %v366 = vunpack.c.l.b16 %v351
  %v367 = vpack.c.b16 %v364, %v363
  %v368 = vpack.c.b16 %v366, %v365
  %v372 = vsel %vm302, %v347, 0
  %374 = vmatprep.subr.bf16.mxu0 0
  %375 = vmatpush1.bf16.msra.mxu0 %v367
  %376 = vmatprep.subr.bf16.mxu0 0
  %377 = vmatpush1.bf16.msra.mxu0 %v368
  %378 = vmatprep.subr.bf16.mxu0 0
  %379 = vmatpush1.bf16.msra.mxu0 0
  %380 = vmatprep.subr.bf16.mxu0 0
  %381 = vmatpush1.bf16.msra.mxu0 0
  %382 = vmatprep.subr.bf16.mxu0 0
  %383 = vmatpush1.bf16.msra.mxu0 0
  %384 = vmatprep.subr.bf16.mxu0 0
  %385 = vmatpush1.bf16.msra.mxu0 0
  %386 = vmatprep.subr.bf16.mxu0 0
  %387 = vmatpush1.bf16.msra.mxu0 0
  %388 = vmatprep.subr.bf16.mxu0 0
  %389 = vmatpush1.bf16.msra.mxu0 0
  %390 = vmatprep.subr.bf16.mxu0 0
  %391 = vmatpush1.bf16.msra.mxu0 0
  %392 = vmatprep.subr.bf16.mxu0 0
  %393 = vmatpush1.bf16.msra.mxu0 0
  %394 = vmatprep.subr.bf16.mxu0 0
  %395 = vmatpush1.bf16.msra.mxu0 0
  %396 = vmatprep.subr.bf16.mxu0 0
  %397 = vmatpush1.bf16.msra.mxu0 0
  %398 = vmatprep.subr.bf16.mxu0 0
  %399 = vmatpush1.bf16.msra.mxu0 0
  %400 = vmatprep.subr.bf16.mxu0 0
  %401 = vmatpush1.bf16.msra.mxu0 0
  %402 = vmatprep.subr.bf16.mxu0 0
  %403 = vmatpush1.bf16.msra.mxu0 0
  %404 = vmatprep.subr.bf16.mxu0 0
  %405 = vmatpush1.bf16.msra.mxu0 0
  %406 = vmatprep.mubr.bf16.mxu0 0
  %407 = vmatmul.mubr.bf16.gmra.mrb[0].mxu0 %v372
  %v408 = vpop.f32.mrb[0].mxu0
  %v409 = vadd.f32 %v357, %v408
  %v410 = vpop.f32.mrb[0].mxu0
  %v411 = vpop.f32.mrb[0].mxu0
  %v412 = vadd.f32 %v357, %v411
  %v413 = vpop.f32.mrb[0].mxu0
  %414 = vdwg.mxu0
  %v415 = vpack.c.bf16 %v412, %v409
  %417 = vrot.lane.b32.xlu0 %v415, 96
  %v418 = vpop.permute.xlu0 %417
  %vm419 = vcmask 64512
  %v421 = vsel %vm419, %v415, 0
  %v424 = vsel %vm419, %v418, 0
  %426 = vmatprep.subr.bf16.mxu0 0
  %427 = vmatpush1.bf16.xpose.msra.mxu0 %v424
  %428 = vmatprep.subr.bf16.mxu0 0
  %429 = vmatpush1.bf16.xpose.msra.mxu0 0
  %430 = vmatprep.subr.bf16.mxu0 0
  %431 = vmatpush1.bf16.xpose.msra.mxu0 0
  %432 = vmatprep.subr.bf16.mxu0 0
  %433 = vmatpush1.bf16.xpose.msra.mxu0 0
  %434 = vmatprep.subr.bf16.mxu0 0
  %435 = vmatpush1.bf16.xpose.msra.mxu0 0
  %436 = vmatprep.subr.bf16.mxu0 0
  %437 = vmatpush1.bf16.xpose.msra.mxu0 0
  %438 = vmatprep.subr.bf16.mxu0 0
  %439 = vmatpush1.bf16.xpose.msra.mxu0 0
  %440 = vmatprep.subr.bf16.mxu0 0
  %441 = vmatpush1.bf16.xpose.msra.mxu0 0
  %442 = vmatprep.subr.bf16.mxu0 0
  %443 = vmatpush1.bf16.xpose.msra.mxu0 0
  %444 = vmatprep.subr.bf16.mxu0 0
  %445 = vmatpush1.bf16.xpose.msra.mxu0 0
  %446 = vmatprep.subr.bf16.mxu0 0
  %447 = vmatpush1.bf16.xpose.msra.mxu0 0
  %448 = vmatprep.subr.bf16.mxu0 0
  %449 = vmatpush1.bf16.xpose.msra.mxu0 0
  %450 = vmatprep.subr.bf16.mxu0 0
  %451 = vmatpush1.bf16.xpose.msra.mxu0 0
  %452 = vmatprep.subr.bf16.mxu0 0
  %453 = vmatpush1.bf16.xpose.msra.mxu0 0
  %454 = vmatprep.subr.bf16.mxu0 0
  %455 = vmatpush1.bf16.xpose.msra.mxu0 0
  %456 = vmatprep.subr.bf16.mxu0 0
  %457 = vmatpush1.bf16.xpose.msra.mxu0 0
  %458 = vmatprep.mubr.bf16.mxu0 0
  %459 = vmatmul.mubr.bf16.gmra.mrb[0].mxu0 %v421
  %v460 = vpop.f32.mrb[0].mxu0
  %v461 = vadd.f32 %v298, %v460
  %v462 = vpop.f32.mrb[0].mxu0
  %v463 = vpop.f32.mrb[0].mxu0
  %v464 = vadd.f32 %v299, %v463
  %v465 = vpop.f32.mrb[0].mxu0
  %466 = vdwg.mxu0
  %vm467 = vcmask 121856
  %v468 = vsel %vm467, %v461, -inf
  %469 = vmax.xlane.f32.xlu0 %v468
  %v470 = vpop.xlane.xlu0 %469
  %vm471 = vcmask 120832
  %v472 = vsel %vm471, %v464, -inf
  %473 = vmax.xlane.f32.xlu0 %v472
  %v474 = vpop.xlane.xlu0 %473
  %v475 = vsub.f32 %v461, %v470
  %v476 = vsub.f32 %v464, %v474
  %v477 = vmul.f32 %v475, 1.442695
  %v478 = vpow.pop %v477
  %v479 = vmul.f32 %v476, 1.442695
  %v480 = vpow.pop %v479
  %v481 = vsel %vm467, %v478, 0.0
  %482 = vadd.xlane.f32.xlu0 %v481
  %v483 = vpop.xlane.xlu0 %482
  %v484 = vsel %vm471, %v480, 0.0
  %485 = vadd.xlane.f32.xlu0 %v484
  %v486 = vpop.xlane.xlu0 %485
  %v487 = vrcp.pop %v483
  %v488 = vrcp.pop %v486
  %v489 = vmul.f32 %v478, %v487
  %v490 = vmul.f32 %v480, %v488
  %v491 = vpack.c.bf16 %v490, %v489
  %492 = vrot.lane.b32.xlu0 %v415, 64
  %v493 = vpop.permute.xlu0 %492
  %v495 = vsel %vm467, %v491, 0
  %vm497 = vcmask 1046528
  %vm498 = vcmask 1047552
  %v499 = vsel %vm497, 4294967295, 65535
  %v500 = vsel %vm498, %v499, 0
  %v502 = vand.u32 %v493, %v500
  %504 = vmatprep.subr.bf16.mxu0 0
  %505 = vmatpush1.bf16.msra.mxu0 %v502
  %506 = vmatprep.subr.bf16.mxu0 0
  %507 = vmatpush1.bf16.msra.mxu0 0
  %508 = vmatprep.subr.bf16.mxu0 0
  %509 = vmatpush1.bf16.msra.mxu0 0
  %510 = vmatprep.subr.bf16.mxu0 0
  %511 = vmatpush1.bf16.msra.mxu0 0
  %512 = vmatprep.subr.bf16.mxu0 0
  %513 = vmatpush1.bf16.msra.mxu0 0
  %514 = vmatprep.subr.bf16.mxu0 0
  %515 = vmatpush1.bf16.msra.mxu0 0
  %516 = vmatprep.subr.bf16.mxu0 0
  %517 = vmatpush1.bf16.msra.mxu0 0
  %518 = vmatprep.subr.bf16.mxu0 0
  %519 = vmatpush1.bf16.msra.mxu0 0
  %520 = vmatprep.subr.bf16.mxu0 0
  %521 = vmatpush1.bf16.msra.mxu0 0
  %522 = vmatprep.subr.bf16.mxu0 0
  %523 = vmatpush1.bf16.msra.mxu0 0
  %524 = vmatprep.subr.bf16.mxu0 0
  %525 = vmatpush1.bf16.msra.mxu0 0
  %526 = vmatprep.subr.bf16.mxu0 0
  %527 = vmatpush1.bf16.msra.mxu0 0
  %528 = vmatprep.subr.bf16.mxu0 0
  %529 = vmatpush1.bf16.msra.mxu0 0
  %530 = vmatprep.subr.bf16.mxu0 0
  %531 = vmatpush1.bf16.msra.mxu0 0
  %532 = vmatprep.subr.bf16.mxu0 0
  %533 = vmatpush1.bf16.msra.mxu0 0
  %534 = vmatprep.subr.bf16.mxu0 0
  %535 = vmatpush1.bf16.msra.mxu0 0
  %536 = vmatprep.mubr.bf16.mxu0 0
  %537 = vmatmul.mubr.bf16.gmra.mrb[0].mxu0 %v495
  %v538 = vpop.f32.mrb[0].mxu0
  %v539 = vadd.f32 0.0, %v538
  %v540 = vpop.f32.mrb[0].mxu0
  %v541 = vpop.f32.mrb[0].mxu0
  %v542 = vadd.f32 0.0, %v541
  %v543 = vpop.f32.mrb[0].mxu0
  %544 = vdwg.mxu0
  %545 = vrot.lane.b32.xlu0 %v415, 120
  %v546 = vpop.permute.xlu0 %545
  %547 = vrot.lane.b32.xlu0 %v415, 88
  %v548 = vpop.permute.xlu0 %547
  %v550 = vsel %vm419, %v546, 0
  %v553 = vsel %vm419, %v548, 0
  %555 = vmatprep.subr.bf16.mxu0 0
  %556 = vmatpush1.bf16.xpose.msra.mxu0 %v553
  %557 = vmatprep.subr.bf16.mxu0 0
  %558 = vmatpush1.bf16.xpose.msra.mxu0 0
  %559 = vmatprep.subr.bf16.mxu0 0
  %560 = vmatpush1.bf16.xpose.msra.mxu0 0
  %561 = vmatprep.subr.bf16.mxu0 0
  %562 = vmatpush1.bf16.xpose.msra.mxu0 0
  %563 = vmatprep.subr.bf16.mxu0 0
  %564 = vmatpush1.bf16.xpose.msra.mxu0 0
  %565 = vmatprep.subr.bf16.mxu0 0
  %566 = vmatpush1.bf16.xpose.msra.mxu0 0
  %567 = vmatprep.subr.bf16.mxu0 0
  %568 = vmatpush1.bf16.xpose.msra.mxu0 0
  %569 = vmatprep.subr.bf16.mxu0 0
  %570 = vmatpush1.bf16.xpose.msra.mxu0 0
  %571 = vmatprep.subr.bf16.mxu0 0
  %572 = vmatpush1.bf16.xpose.msra.mxu0 0
  %573 = vmatprep.subr.bf16.mxu0 0
  %574 = vmatpush1.bf16.xpose.msra.mxu0 0
  %575 = vmatprep.subr.bf16.mxu0 0
  %576 = vmatpush1.bf16.xpose.msra.mxu0 0
  %577 = vmatprep.subr.bf16.mxu0 0
  %578 = vmatpush1.bf16.xpose.msra.mxu0 0
  %579 = vmatprep.subr.bf16.mxu0 0
  %580 = vmatpush1.bf16.xpose.msra.mxu0 0
  %581 = vmatprep.subr.bf16.mxu0 0
  %582 = vmatpush1.bf16.xpose.msra.mxu0 0
  %583 = vmatprep.subr.bf16.mxu0 0
  %584 = vmatpush1.bf16.xpose.msra.mxu0 0
  %585 = vmatprep.subr.bf16.mxu0 0
  %586 = vmatpush1.bf16.xpose.msra.mxu0 0
  %587 = vmatprep.mubr.bf16.mxu0 0
  %588 = vmatmul.mubr.bf16.gmra.mrb[0].mxu0 %v550
  %v589 = vpop.f32.mrb[0].mxu0
  %v590 = vadd.f32 %v298, %v589
  %v591 = vpop.f32.mrb[0].mxu0
  %v592 = vpop.f32.mrb[0].mxu0
  %v593 = vadd.f32 %v299, %v592
  %v594 = vpop.f32.mrb[0].mxu0
  %595 = vdwg.mxu0
  %v596 = vsel %vm467, %v590, -inf
  %597 = vmax.xlane.f32.xlu0 %v596
  %v598 = vpop.xlane.xlu0 %597
  %v599 = vsel %vm471, %v593, -inf
  %600 = vmax.xlane.f32.xlu0 %v599
  %v601 = vpop.xlane.xlu0 %600
  %v602 = vsub.f32 %v590, %v598
  %v603 = vsub.f32 %v593, %v601
  %v604 = vmul.f32 %v602, 1.442695
  %v605 = vpow.pop %v604
  %v606 = vmul.f32 %v603, 1.442695
  %v607 = vpow.pop %v606
  %v608 = vsel %vm467, %v605, 0.0
  %609 = vadd.xlane.f32.xlu0 %v608
  %v610 = vpop.xlane.xlu0 %609
  %v611 = vsel %vm471, %v607, 0.0
  %612 = vadd.xlane.f32.xlu0 %v611
  %v613 = vpop.xlane.xlu0 %612
  %v614 = vrcp.pop %v610
  %v615 = vrcp.pop %v613
  %v616 = vmul.f32 %v605, %v614
  %v617 = vmul.f32 %v607, %v615
  %v618 = vpack.c.bf16 %v617, %v616
  %619 = vrot.lane.b32.xlu0 %v415, 56
  %v620 = vpop.permute.xlu0 %619
  %v622 = vsel %vm467, %v618, 0
  %v625 = vand.u32 %v620, %v500
  %627 = vmatprep.subr.bf16.mxu0 0
  %628 = vmatpush1.bf16.msra.mxu0 %v625
  %629 = vmatprep.subr.bf16.mxu0 0
  %630 = vmatpush1.bf16.msra.mxu0 0
  %631 = vmatprep.subr.bf16.mxu0 0
  %632 = vmatpush1.bf16.msra.mxu0 0
  %633 = vmatprep.subr.bf16.mxu0 0
  %634 = vmatpush1.bf16.msra.mxu0 0
  %635 = vmatprep.subr.bf16.mxu0 0
  %636 = vmatpush1.bf16.msra.mxu0 0
  %637 = vmatprep.subr.bf16.mxu0 0
  %638 = vmatpush1.bf16.msra.mxu0 0
  %639 = vmatprep.subr.bf16.mxu0 0
  %640 = vmatpush1.bf16.msra.mxu0 0
  %641 = vmatprep.subr.bf16.mxu0 0
  %642 = vmatpush1.bf16.msra.mxu0 0
  %643 = vmatprep.subr.bf16.mxu0 0
  %644 = vmatpush1.bf16.msra.mxu0 0
  %645 = vmatprep.subr.bf16.mxu0 0
  %646 = vmatpush1.bf16.msra.mxu0 0
  %647 = vmatprep.subr.bf16.mxu0 0
  %648 = vmatpush1.bf16.msra.mxu0 0
  %649 = vmatprep.subr.bf16.mxu0 0
  %650 = vmatpush1.bf16.msra.mxu0 0
  %651 = vmatprep.subr.bf16.mxu0 0
  %652 = vmatpush1.bf16.msra.mxu0 0
  %653 = vmatprep.subr.bf16.mxu0 0
  %654 = vmatpush1.bf16.msra.mxu0 0
  %655 = vmatprep.subr.bf16.mxu0 0
  %656 = vmatpush1.bf16.msra.mxu0 0
  %657 = vmatprep.subr.bf16.mxu0 0
  %658 = vmatpush1.bf16.msra.mxu0 0
  %659 = vmatprep.mubr.bf16.mxu0 0
  %660 = vmatmul.mubr.bf16.gmra.mrb[0].mxu0 %v622
  %v661 = vpop.f32.mrb[0].mxu0
  %v662 = vadd.f32 0.0, %v661
  %v663 = vpop.f32.mrb[0].mxu0
  %v664 = vpop.f32.mrb[0].mxu0
  %v665 = vadd.f32 0.0, %v664
  %v666 = vpop.f32.mrb[0].mxu0
  %667 = vdwg.mxu0
  %668 = vrot.lane.b32.xlu0 %v415, 112
  %v669 = vpop.permute.xlu0 %668
  %670 = vrot.lane.b32.xlu0 %v415, 80
  %v671 = vpop.permute.xlu0 %670
  %v673 = vsel %vm419, %v669, 0
  %v676 = vsel %vm419, %v671, 0
  %678 = vmatprep.subr.bf16.mxu0 0
  %679 = vmatpush1.bf16.xpose.msra.mxu0 %v676
  %680 = vmatprep.subr.bf16.mxu0 0
  %681 = vmatpush1.bf16.xpose.msra.mxu0 0
  %682 = vmatprep.subr.bf16.mxu0 0
  %683 = vmatpush1.bf16.xpose.msra.mxu0 0
  %684 = vmatprep.subr.bf16.mxu0 0
  %685 = vmatpush1.bf16.xpose.msra.mxu0 0
  %686 = vmatprep.subr.bf16.mxu0 0
  %687 = vmatpush1.bf16.xpose.msra.mxu0 0
  %688 = vmatprep.subr.bf16.mxu0 0
  %689 = vmatpush1.bf16.xpose.msra.mxu0 0
  %690 = vmatprep.subr.bf16.mxu0 0
  %691 = vmatpush1.bf16.xpose.msra.mxu0 0
  %692 = vmatprep.subr.bf16.mxu0 0
  %693 = vmatpush1.bf16.xpose.msra.mxu0 0
  %694 = vmatprep.subr.bf16.mxu0 0
  %695 = vmatpush1.bf16.xpose.msra.mxu0 0
  %696 = vmatprep.subr.bf16.mxu0 0
  %697 = vmatpush1.bf16.xpose.msra.mxu0 0
  %698 = vmatprep.subr.bf16.mxu0 0
  %699 = vmatpush1.bf16.xpose.msra.mxu0 0
  %700 = vmatprep.subr.bf16.mxu0 0
  %701 = vmatpush1.bf16.xpose.msra.mxu0 0
  %702 = vmatprep.subr.bf16.mxu0 0
  %703 = vmatpush1.bf16.xpose.msra.mxu0 0
  %704 = vmatprep.subr.bf16.mxu0 0
  %705 = vmatpush1.bf16.xpose.msra.mxu0 0
  %706 = vmatprep.subr.bf16.mxu0 0
  %707 = vmatpush1.bf16.xpose.msra.mxu0 0
  %708 = vmatprep.subr.bf16.mxu0 0
  %709 = vmatpush1.bf16.xpose.msra.mxu0 0
  %710 = vmatprep.mubr.bf16.mxu0 0
  %711 = vmatmul.mubr.bf16.gmra.mrb[0].mxu0 %v673
  %v712 = vpop.f32.mrb[0].mxu0
  %v713 = vadd.f32 %v298, %v712
  %v714 = vpop.f32.mrb[0].mxu0
  %v715 = vpop.f32.mrb[0].mxu0
  %v716 = vadd.f32 %v299, %v715
  %v717 = vpop.f32.mrb[0].mxu0
  %718 = vdwg.mxu0
  %v719 = vsel %vm467, %v713, -inf
  %720 = vmax.xlane.f32.xlu0 %v719
  %v721 = vpop.xlane.xlu0 %720
  %v722 = vsel %vm471, %v716, -inf
  %723 = vmax.xlane.f32.xlu0 %v722
  %v724 = vpop.xlane.xlu0 %723
  %v725 = vsub.f32 %v713, %v721
  %v726 = vsub.f32 %v716, %v724
  %v727 = vmul.f32 %v725, 1.442695
  %v728 = vpow.pop %v727
  %v729 = vmul.f32 %v726, 1.442695
  %v730 = vpow.pop %v729
  %v731 = vsel %vm467, %v728, 0.0
  %732 = vadd.xlane.f32.xlu0 %v731
  %v733 = vpop.xlane.xlu0 %732
  %v734 = vsel %vm471, %v730, 0.0
  %735 = vadd.xlane.f32.xlu0 %v734
  %v736 = vpop.xlane.xlu0 %735
  %v737 = vrcp.pop %v733
  %v738 = vrcp.pop %v736
  %v739 = vmul.f32 %v728, %v737
  %v740 = vmul.f32 %v730, %v738
  %v741 = vpack.c.bf16 %v740, %v739
  %742 = vrot.lane.b32.xlu0 %v415, 48
  %v743 = vpop.permute.xlu0 %742
  %v745 = vsel %vm467, %v741, 0
  %v748 = vand.u32 %v743, %v500
  %750 = vmatprep.subr.bf16.mxu0 0
  %751 = vmatpush1.bf16.msra.mxu0 %v748
  %752 = vmatprep.subr.bf16.mxu0 0
  %753 = vmatpush1.bf16.msra.mxu0 0
  %754 = vmatprep.subr.bf16.mxu0 0
  %755 = vmatpush1.bf16.msra.mxu0 0
  %756 = vmatprep.subr.bf16.mxu0 0
  %757 = vmatpush1.bf16.msra.mxu0 0
  %758 = vmatprep.subr.bf16.mxu0 0
  %759 = vmatpush1.bf16.msra.mxu0 0
  %760 = vmatprep.subr.bf16.mxu0 0
  %761 = vmatpush1.bf16.msra.mxu0 0
  %762 = vmatprep.subr.bf16.mxu0 0
  %763 = vmatpush1.bf16.msra.mxu0 0
  %764 = vmatprep.subr.bf16.mxu0 0
  %765 = vmatpush1.bf16.msra.mxu0 0
  %766 = vmatprep.subr.bf16.mxu0 0
  %767 = vmatpush1.bf16.msra.mxu0 0
  %768 = vmatprep.subr.bf16.mxu0 0
  %769 = vmatpush1.bf16.msra.mxu0 0
  %770 = vmatprep.subr.bf16.mxu0 0
  %771 = vmatpush1.bf16.msra.mxu0 0
  %772 = vmatprep.subr.bf16.mxu0 0
  %773 = vmatpush1.bf16.msra.mxu0 0
  %774 = vmatprep.subr.bf16.mxu0 0
  %775 = vmatpush1.bf16.msra.mxu0 0
  %776 = vmatprep.subr.bf16.mxu0 0
  %777 = vmatpush1.bf16.msra.mxu0 0
  %778 = vmatprep.subr.bf16.mxu0 0
  %779 = vmatpush1.bf16.msra.mxu0 0
  %780 = vmatprep.subr.bf16.mxu0 0
  %781 = vmatpush1.bf16.msra.mxu0 0
  %782 = vmatprep.mubr.bf16.mxu0 0
  %783 = vmatmul.mubr.bf16.gmra.mrb[0].mxu0 %v745
  %v784 = vpop.f32.mrb[0].mxu0
  %v785 = vadd.f32 0.0, %v784
  %v786 = vpop.f32.mrb[0].mxu0
  %v787 = vpop.f32.mrb[0].mxu0
  %v788 = vadd.f32 0.0, %v787
  %v789 = vpop.f32.mrb[0].mxu0
  %790 = vdwg.mxu0
  %791 = vrot.lane.b32.xlu0 %v415, 104
  %v792 = vpop.permute.xlu0 %791
  %793 = vrot.lane.b32.xlu0 %v415, 72
  %v794 = vpop.permute.xlu0 %793
  %v796 = vsel %vm419, %v792, 0
  %v799 = vsel %vm419, %v794, 0
  %801 = vmatprep.subr.bf16.mxu0 0
  %802 = vmatpush1.bf16.xpose.msra.mxu0 %v799
  %803 = vmatprep.subr.bf16.mxu0 0
  %804 = vmatpush1.bf16.xpose.msra.mxu0 0
  %805 = vmatprep.subr.bf16.mxu0 0
  %806 = vmatpush1.bf16.xpose.msra.mxu0 0
  %807 = vmatprep.subr.bf16.mxu0 0
  %808 = vmatpush1.bf16.xpose.msra.mxu0 0
  %809 = vmatprep.subr.bf16.mxu0 0
  %810 = vmatpush1.bf16.xpose.msra.mxu0 0
  %811 = vmatprep.subr.bf16.mxu0 0
  %812 = vmatpush1.bf16.xpose.msra.mxu0 0
  %813 = vmatprep.subr.bf16.mxu0 0
  %814 = vmatpush1.bf16.xpose.msra.mxu0 0
  %815 = vmatprep.subr.bf16.mxu0 0
  %816 = vmatpush1.bf16.xpose.msra.mxu0 0
  %817 = vmatprep.subr.bf16.mxu0 0
  %818 = vmatpush1.bf16.xpose.msra.mxu0 0
  %819 = vmatprep.subr.bf16.mxu0 0
  %820 = vmatpush1.bf16.xpose.msra.mxu0 0
  %821 = vmatprep.subr.bf16.mxu0 0
  %822 = vmatpush1.bf16.xpose.msra.mxu0 0
  %823 = vmatprep.subr.bf16.mxu0 0
  %824 = vmatpush1.bf16.xpose.msra.mxu0 0
  %825 = vmatprep.subr.bf16.mxu0 0
  %826 = vmatpush1.bf16.xpose.msra.mxu0 0
  %827 = vmatprep.subr.bf16.mxu0 0
  %828 = vmatpush1.bf16.xpose.msra.mxu0 0
  %829 = vmatprep.subr.bf16.mxu0 0
  %830 = vmatpush1.bf16.xpose.msra.mxu0 0
  %831 = vmatprep.subr.bf16.mxu0 0
  %832 = vmatpush1.bf16.xpose.msra.mxu0 0
  %833 = vmatprep.mubr.bf16.mxu0 0
  %834 = vmatmul.mubr.bf16.gmra.mrb[0].mxu0 %v796
  %v835 = vpop.f32.mrb[0].mxu0
  %v836 = vadd.f32 %v298, %v835
  %v837 = vpop.f32.mrb[0].mxu0
  %v838 = vpop.f32.mrb[0].mxu0
  %v839 = vadd.f32 %v299, %v838
  %v840 = vpop.f32.mrb[0].mxu0
  %841 = vdwg.mxu0
  %v842 = vsel %vm467, %v836, -inf
  %843 = vmax.xlane.f32.xlu0 %v842
  %v844 = vpop.xlane.xlu0 %843
  %v845 = vsel %vm471, %v839, -inf
  %846 = vmax.xlane.f32.xlu0 %v845
  %v847 = vpop.xlane.xlu0 %846
  %v848 = vsub.f32 %v836, %v844
  %v849 = vsub.f32 %v839, %v847
  %v850 = vmul.f32 %v848, 1.442695
  %v851 = vpow.pop %v850
  %v852 = vmul.f32 %v849, 1.442695
  %v853 = vpow.pop %v852
  %v854 = vsel %vm467, %v851, 0.0
  %855 = vadd.xlane.f32.xlu0 %v854
  %v856 = vpop.xlane.xlu0 %855
  %v857 = vsel %vm471, %v853, 0.0
  %858 = vadd.xlane.f32.xlu0 %v857
  %v859 = vpop.xlane.xlu0 %858
  %v860 = vrcp.pop %v856
  %v861 = vrcp.pop %v859
  %v862 = vmul.f32 %v851, %v860
  %v863 = vmul.f32 %v853, %v861
  %v864 = vpack.c.bf16 %v863, %v862
  %865 = vrot.lane.b32.xlu0 %v415, 40
  %v866 = vpop.permute.xlu0 %865
  %v868 = vsel %vm467, %v864, 0
  %v871 = vand.u32 %v866, %v500
  %873 = vmatprep.subr.bf16.mxu0 0
  %874 = vmatpush1.bf16.msra.mxu0 %v871
  %875 = vmatprep.subr.bf16.mxu0 0
  %876 = vmatpush1.bf16.msra.mxu0 0
  %877 = vmatprep.subr.bf16.mxu0 0
  %878 = vmatpush1.bf16.msra.mxu0 0
  %879 = vmatprep.subr.bf16.mxu0 0
  %880 = vmatpush1.bf16.msra.mxu0 0
  %881 = vmatprep.subr.bf16.mxu0 0
  %882 = vmatpush1.bf16.msra.mxu0 0
  %883 = vmatprep.subr.bf16.mxu0 0
  %884 = vmatpush1.bf16.msra.mxu0 0
  %885 = vmatprep.subr.bf16.mxu0 0
  %886 = vmatpush1.bf16.msra.mxu0 0
  %887 = vmatprep.subr.bf16.mxu0 0
  %888 = vmatpush1.bf16.msra.mxu0 0
  %889 = vmatprep.subr.bf16.mxu0 0
  %890 = vmatpush1.bf16.msra.mxu0 0
  %891 = vmatprep.subr.bf16.mxu0 0
  %892 = vmatpush1.bf16.msra.mxu0 0
  %893 = vmatprep.subr.bf16.mxu0 0
  %894 = vmatpush1.bf16.msra.mxu0 0
  %895 = vmatprep.subr.bf16.mxu0 0
  %896 = vmatpush1.bf16.msra.mxu0 0
  %897 = vmatprep.subr.bf16.mxu0 0
  %898 = vmatpush1.bf16.msra.mxu0 0
  %899 = vmatprep.subr.bf16.mxu0 0
  %900 = vmatpush1.bf16.msra.mxu0 0
  %901 = vmatprep.subr.bf16.mxu0 0
  %902 = vmatpush1.bf16.msra.mxu0 0
  %903 = vmatprep.subr.bf16.mxu0 0
  %904 = vmatpush1.bf16.msra.mxu0 0
  %905 = vmatprep.mubr.bf16.mxu0 0
  %906 = vmatmul.mubr.bf16.gmra.mrb[0].mxu0 %v868
  %v907 = vpop.f32.mrb[0].mxu0
  %v908 = vadd.f32 0.0, %v907
  %v909 = vpop.f32.mrb[0].mxu0
  %v910 = vpop.f32.mrb[0].mxu0
  %v911 = vadd.f32 0.0, %v910
  %v912 = vpop.f32.mrb[0].mxu0
  %913 = vdwg.mxu0
  %916 = vrot.lane.b32.xlu0 %v662, 8
  %v917 = vpop.permute.xlu0 %916
  %918 = vrot.lane.b32.xlu0 %v665, 8
  %v919 = vpop.permute.xlu0 %918
  %924 = vrot.lane.b32.xlu0 %v785, 16
  %v925 = vpop.permute.xlu0 %924
  %926 = vrot.lane.b32.xlu0 %v788, 16
  %v927 = vpop.permute.xlu0 %926
  %932 = vrot.lane.b32.xlu0 %v908, 24
  %v933 = vpop.permute.xlu0 %932
  %934 = vrot.lane.b32.xlu0 %v911, 24
  %v935 = vpop.permute.xlu0 %934
  %v938 = vsel %vm419, %v539, %v917
  %v939 = vsel %vm419, %v542, %v919
  %vm940 = vcmask 130048
  %v941 = vsel %vm940, %v938, %v925
  %v942 = vsel %vm940, %v939, %v927
  %vm943 = vcmask 195584
  %v944 = vsel %vm943, %v941, %v933
  %v945 = vsel %vm943, %v942, %v935
  %v946 = vpack.c.bf16 %v945, %v944
  %v947 = vld [vmem:[%s10] sm:$0xf]
  %v948 = vld [vmem:[%s10 + $0x4] sm:$0xf]
  %v949 = vld [vmem:[%s10 + $0x8] sm:$0xf]
  %v950 = vld [vmem:[%s10 + $0xc] sm:$0xf]
  %v955 = vunpack.c.l.b16 %v947
  %v956 = vunpack.c.l.b16 %v948
  %v957 = vunpack.c.l.b16 %v949
  %v958 = vunpack.c.l.b16 %v950
  %v959 = vpack.c.b16 %v956, %v955
  %v960 = vpack.c.b16 %v958, %v957
  %v964 = vsel %vm302, %v946, 0
  %966 = vmatprep.subr.bf16.mxu0 0
  %967 = vmatpush1.bf16.msra.mxu0 %v959
  %968 = vmatprep.subr.bf16.mxu0 0
  %969 = vmatpush1.bf16.msra.mxu0 %v960
  %970 = vmatprep.subr.bf16.mxu0 0
  %971 = vmatpush1.bf16.msra.mxu0 0
  %972 = vmatprep.subr.bf16.mxu0 0
  %973 = vmatpush1.bf16.msra.mxu0 0
  %974 = vmatprep.subr.bf16.mxu0 0
  %975 = vmatpush1.bf16.msra.mxu0 0
  %976 = vmatprep.subr.bf16.mxu0 0
  %977 = vmatpush1.bf16.msra.mxu0 0
  %978 = vmatprep.subr.bf16.mxu0 0
  %979 = vmatpush1.bf16.msra.mxu0 0
  %980 = vmatprep.subr.bf16.mxu0 0
  %981 = vmatpush1.bf16.msra.mxu0 0
  %982 = vmatprep.subr.bf16.mxu0 0
  %983 = vmatpush1.bf16.msra.mxu0 0
  %984 = vmatprep.subr.bf16.mxu0 0
  %985 = vmatpush1.bf16.msra.mxu0 0
  %986 = vmatprep.subr.bf16.mxu0 0
  %987 = vmatpush1.bf16.msra.mxu0 0
  %988 = vmatprep.subr.bf16.mxu0 0
  %989 = vmatpush1.bf16.msra.mxu0 0
  %990 = vmatprep.subr.bf16.mxu0 0
  %991 = vmatpush1.bf16.msra.mxu0 0
  %992 = vmatprep.subr.bf16.mxu0 0
  %993 = vmatpush1.bf16.msra.mxu0 0
  %994 = vmatprep.subr.bf16.mxu0 0
  %995 = vmatpush1.bf16.msra.mxu0 0
  %996 = vmatprep.subr.bf16.mxu0 0
  %997 = vmatpush1.bf16.msra.mxu0 0
  %998 = vmatprep.mubr.bf16.mxu0 0
  %999 = vmatmul.mubr.bf16.gmra.mrb[0].mxu0 %v964
  %v1000 = vpop.f32.mrb[0].mxu0
  %v1001 = vadd.f32 0.0, %v1000
  %v1002 = vpop.f32.mrb[0].mxu0
  %v1003 = vpop.f32.mrb[0].mxu0
  %v1004 = vadd.f32 0.0, %v1003
  %v1005 = vpop.f32.mrb[0].mxu0
  %1006 = vdwg.mxu0
  %v1007 = vadd.f32 %v296, %v1001
  %v1008 = vadd.f32 %v297, %v1004
  %v1009 = vld [vmem:[%s11] sm:$0x1]
  %v1011 = vlaneseq
  %v1012 = vshrl.u32 %v1011, 7
  %v1013 = vsub.s32 0, %v1012
  %v1014 = vrot.slane %v1009, %v1013
  %v1016 = vadd.f32 %v1007, %v1014
  %v1017 = vadd.f32 %v1008, %v1014
  %v1018 = vld [vmem:[%s12] sm:$0x1]
  %v1019 = vld [vmem:[%s13] sm:$0x1]
  %v1020 = vsel %vm302, %v1016, 0.0
  %1021 = vadd.xlane.f32.xlu0 %v1020
  %v1022 = vpop.xlane.xlu0 %1021
  %v1023 = vsel %vm306, %v1017, 0.0
  %1024 = vadd.xlane.f32.xlu0 %v1023
  %v1025 = vpop.xlane.xlu0 %1024
  %v1026 = vmul.f32 %v1022, %v310
  %v1027 = vmul.f32 %v1025, %v310
  %v1028 = vsub.f32 %v1016, %v1026
  %v1029 = vsub.f32 %v1017, %v1027
  %v1030 = vmul.f32 %v1028, %v1028
  %v1031 = vmul.f32 %v1029, %v1029
  %v1032 = vsel %vm302, %v1030, 0.0
  %1033 = vadd.xlane.f32.xlu0 %v1032
  %v1034 = vpop.xlane.xlu0 %1033
  %v1035 = vsel %vm306, %v1031, 0.0
  %1036 = vadd.xlane.f32.xlu0 %v1035
  %v1037 = vpop.xlane.xlu0 %1036
  %v1038 = vmul.f32 %v1034, %v310
  %v1039 = vmul.f32 %v1037, %v310
  %v1040 = vadd.f32 %v1038, 1e-05
  %v1041 = vadd.f32 %v1039, 1e-05
  %v1042 = vrsqrt.pop %v1040
  %v1043 = vrsqrt.pop %v1041
  %v1044 = vmul.f32 %v1028, %v1042
  %v1045 = vmul.f32 %v1029, %v1043
  %v1047 = vlaneseq
  %v1048 = vshrl.u32 %v1047, 7
  %v1049 = vsub.s32 0, %v1048
  %v1050 = vrot.slane %v1018, %v1049
  %v1052 = vmul.f32 %v1044, %v1050
  %v1053 = vmul.f32 %v1045, %v1050
  %v1055 = vlaneseq
  %v1056 = vshrl.u32 %v1055, 7
  %v1057 = vsub.s32 0, %v1056
  %v1058 = vrot.slane %v1019, %v1057
  %v1060 = vadd.f32 %v1052, %v1058
  %v1061 = vadd.f32 %v1053, %v1058
  %v1062 = vpack.c.bf16 %v1061, %v1060
  %v1063 = vld [vmem:[%s14] sm:$0xf]
  %v1064 = vld [vmem:[%s14 + $0x4] sm:$0xf]
  %v1065 = vld [vmem:[%s14 + $0x8] sm:$0xf]
  %v1066 = vld [vmem:[%s14 + $0xc] sm:$0xf]
  %v1067 = vld [vmem:[%s15] sm:$0x1]
  %v1069 = vlaneseq
  %v1070 = vshrl.u32 %v1069, 7
  %v1071 = vsub.s32 0, %v1070
  %v1072 = vrot.slane %v1067, %v1071
  %v1078 = vunpack.c.l.b16 %v1063
  %v1079 = vunpack.c.l.b16 %v1064
  %v1080 = vunpack.c.l.b16 %v1065
  %v1081 = vunpack.c.l.b16 %v1066
  %v1082 = vpack.c.b16 %v1079, %v1078
  %v1083 = vpack.c.b16 %v1081, %v1080
  %v1087 = vsel %vm302, %v1062, 0
  %1089 = vmatprep.subr.bf16.mxu0 0
  %1090 = vmatpush1.bf16.msra.mxu0 %v1082
  %1091 = vmatprep.subr.bf16.mxu0 0
  %1092 = vmatpush1.bf16.msra.mxu0 %v1083
  %1093 = vmatprep.subr.bf16.mxu0 0
  %1094 = vmatpush1.bf16.msra.mxu0 0
  %1095 = vmatprep.subr.bf16.mxu0 0
  %1096 = vmatpush1.bf16.msra.mxu0 0
  %1097 = vmatprep.subr.bf16.mxu0 0
  %1098 = vmatpush1.bf16.msra.mxu0 0
  %1099 = vmatprep.subr.bf16.mxu0 0
  %1100 = vmatpush1.bf16.msra.mxu0 0
  %1101 = vmatprep.subr.bf16.mxu0 0
  %1102 = vmatpush1.bf16.msra.mxu0 0
  %1103 = vmatprep.subr.bf16.mxu0 0
  %1104 = vmatpush1.bf16.msra.mxu0 0
  %1105 = vmatprep.subr.bf16.mxu0 0
  %1106 = vmatpush1.bf16.msra.mxu0 0
  %1107 = vmatprep.subr.bf16.mxu0 0
  %1108 = vmatpush1.bf16.msra.mxu0 0
  %1109 = vmatprep.subr.bf16.mxu0 0
  %1110 = vmatpush1.bf16.msra.mxu0 0
  %1111 = vmatprep.subr.bf16.mxu0 0
  %1112 = vmatpush1.bf16.msra.mxu0 0
  %1113 = vmatprep.subr.bf16.mxu0 0
  %1114 = vmatpush1.bf16.msra.mxu0 0
  %1115 = vmatprep.subr.bf16.mxu0 0
  %1116 = vmatpush1.bf16.msra.mxu0 0
  %1117 = vmatprep.subr.bf16.mxu0 0
  %1118 = vmatpush1.bf16.msra.mxu0 0
  %1119 = vmatprep.subr.bf16.mxu0 0
  %1120 = vmatpush1.bf16.msra.mxu0 0
  %1121 = vmatprep.mubr.bf16.mxu0 0
  %1122 = vmatmul.mubr.bf16.gmra.mrb[0].mxu0 %v1087
  %v1123 = vpop.f32.mrb[0].mxu0
  %v1124 = vadd.f32 %v1072, %v1123
  %v1125 = vpop.f32.mrb[0].mxu0
  %v1126 = vpop.f32.mrb[0].mxu0
  %v1127 = vadd.f32 %v1072, %v1126
  %v1128 = vpop.f32.mrb[0].mxu0
  %1129 = vdwg.mxu0
  %v1130 = vmul.f32 %v1124, 1.702
  %v1131 = vmul.f32 %v1127, 1.702
  %v1132 = vxor.u32 %v1130, 2147483648
  %v1133 = vxor.u32 %v1131, 2147483648
  %v1134 = vmul.f32 %v1132, 1.442695
  %v1135 = vpow.pop %v1134
  %v1136 = vmul.f32 %v1133, 1.442695
  %v1137 = vpow.pop %v1136
  %v1138 = vadd.f32 %v1135, 1.0
  %v1139 = vadd.f32 %v1137, 1.0
  %v1140 = vrcp.pop %v1138
  %v1141 = vmul.f32 1.0, %v1140
  %v1142 = vrcp.pop %v1139
  %v1143 = vmul.f32 1.0, %v1142
  %v1144 = vmul.f32 %v1124, %v1141
  %v1145 = vmul.f32 %v1127, %v1143
  %v1146 = vpack.c.bf16 %v1145, %v1144
  %v1147 = vld [vmem:[%s16] sm:$0xf]
  %v1148 = vld [vmem:[%s16 + $0x4] sm:$0xf]
  %v1149 = vld [vmem:[%s16 + $0x8] sm:$0xf]
  %v1150 = vld [vmem:[%s16 + $0xc] sm:$0xf]
  %v1151 = vld [vmem:[%s16 + $0x10] sm:$0xf]
  %v1152 = vld [vmem:[%s16 + $0x14] sm:$0xf]
  %v1153 = vld [vmem:[%s16 + $0x18] sm:$0xf]
  %v1154 = vld [vmem:[%s16 + $0x1c] sm:$0xf]
  %v1163 = vunpack.c.l.b16 %v1147
  %v1164 = vunpack.c.l.b16 %v1148
  %v1165 = vunpack.c.l.b16 %v1149
  %v1166 = vunpack.c.l.b16 %v1150
  %v1167 = vunpack.c.l.b16 %v1151
  %v1168 = vunpack.c.l.b16 %v1152
  %v1169 = vunpack.c.l.b16 %v1153
  %v1170 = vunpack.c.l.b16 %v1154
  %v1171 = vpack.c.b16 %v1164, %v1163
  %v1172 = vpack.c.b16 %v1166, %v1165
  %v1173 = vpack.c.b16 %v1168, %v1167
  %v1174 = vpack.c.b16 %v1170, %v1169
  %vm1179 = vcmask 523264
  %v1181 = vsel %vm1179, %v1146, 0
  %1183 = vmatprep.subr.bf16.mxu0 0
  %1184 = vmatpush1.bf16.msra.mxu0 %v1171
  %1185 = vmatprep.subr.bf16.mxu0 0
  %1186 = vmatpush1.bf16.msra.mxu0 %v1172
  %1187 = vmatprep.subr.bf16.mxu0 0
  %1188 = vmatpush1.bf16.msra.mxu0 %v1173
  %1189 = vmatprep.subr.bf16.mxu0 0
  %1190 = vmatpush1.bf16.msra.mxu0 %v1174
  %1191 = vmatprep.subr.bf16.mxu0 0
  %1192 = vmatpush1.bf16.msra.mxu0 0
  %1193 = vmatprep.subr.bf16.mxu0 0
  %1194 = vmatpush1.bf16.msra.mxu0 0
  %1195 = vmatprep.subr.bf16.mxu0 0
  %1196 = vmatpush1.bf16.msra.mxu0 0
  %1197 = vmatprep.subr.bf16.mxu0 0
  %1198 = vmatpush1.bf16.msra.mxu0 0
  %1199 = vmatprep.subr.bf16.mxu0 0
  %1200 = vmatpush1.bf16.msra.mxu0 0
  %1201 = vmatprep.subr.bf16.mxu0 0
  %1202 = vmatpush1.bf16.msra.mxu0 0
  %1203 = vmatprep.subr.bf16.mxu0 0
  %1204 = vmatpush1.bf16.msra.mxu0 0
  %1205 = vmatprep.subr.bf16.mxu0 0
  %1206 = vmatpush1.bf16.msra.mxu0 0
  %1207 = vmatprep.subr.bf16.mxu0 0
  %1208 = vmatpush1.bf16.msra.mxu0 0
  %1209 = vmatprep.subr.bf16.mxu0 0
  %1210 = vmatpush1.bf16.msra.mxu0 0
  %1211 = vmatprep.subr.bf16.mxu0 0
  %1212 = vmatpush1.bf16.msra.mxu0 0
  %1213 = vmatprep.subr.bf16.mxu0 0
  %1214 = vmatpush1.bf16.msra.mxu0 0
  %1215 = vmatprep.mubr.bf16.mxu0 0
  %1216 = vmatmul.mubr.bf16.gmra.mrb[0].mxu0 %v1181
  %v1217 = vpop.f32.mrb[0].mxu0
  %v1218 = vadd.f32 0.0, %v1217
  %v1219 = vpop.f32.mrb[0].mxu0
  %v1220 = vpop.f32.mrb[0].mxu0
  %v1221 = vadd.f32 0.0, %v1220
  %v1222 = vpop.f32.mrb[0].mxu0
  %1223 = vdwg.mxu0
  %v1224 = vadd.f32 %v1016, %v1218
  %v1225 = vadd.f32 %v1017, %v1221
  %v1226 = vld [vmem:[%s17] sm:$0x1]
  %v1228 = vlaneseq
  %v1229 = vshrl.u32 %v1228, 7
  %v1230 = vsub.s32 0, %v1229
  %v1231 = vrot.slane %v1226, %v1230
  %v1233 = vadd.f32 %v1224, %v1231
  %v1234 = vadd.f32 %v1225, %v1231
  %1235 = vst.msk [vmem:[#allocation2] sm:$0xff] %vm302, %v1233
  %1236 = vst.msk [vmem:[#allocation2 + $0x8] sm:$0x7f] %vm306, %v1234
  // Predicated region
  $region78: #{_tower_features.1} parent=0 // pred_check
    %p1237 = pneg %p60
  $region79: #{_tower_features.1} parent=0 // pred_check_branch
    %1239 = sbr.rel (%p1237) target = $region81
  $region80: #{_tower_features.1} parent=0 // pred_region
    %1240 = vst.msk [vmem:[%s18] sm:$0xff] %vm302, %v1233
    %1241 = vst.msk [vmem:[%s18 + $0x8] sm:$0x7f] %vm306, %v1234
  $region81: #{_tower_features.1} parent=0 // pred_fallthru
    _
  // Predicated region
  $region82: #{_tower_features.1} parent=0 // pred_check
    _
  $region83: #{_tower_features.1} parent=0 // pred_check_branch
    %1243 = sbr.rel (0) target = $region85
  $region84: #{_tower_features.1} parent=0 // pred_region
    _
  $region85: #{_tower_features.1} parent=0 // pred_fallthru
    _
  // Predicated region
  $region86: #{_tower_features.1} parent=0 // pred_check
    _
  $region87: #{_tower_features.1} parent=0 // pred_check_branch
    %1245 = sbr.rel (0) target = $region89
  $region88: #{_tower_features.1} parent=0 // pred_region
    _
  $region89: #{_tower_features.1} parent=0 // pred_fallthru
    _

</llo_original>
